<compile_context>
chip_gen: v6e
topology: v6e:2x2x1
jax: 0.10.0
libtpu: 0.0.40
codegen_flags: <defaults>
</compile_context>

<pallas_src>
import jax
import jax.numpy as jnp
from jax.experimental import pallas as pl
from jax.experimental.pallas import tpu as pltpu

# Layer dims.
IN_FEATURES = 28 * 28          # 784 (kept unpadded; Mosaic pads K internally)
H0, H1, H2 = 512, 128, 512
OUT = 10
OUT_PAD = 128                  # lane-dense padded output width


def mlp_kernel(x_ref, w0_ref, b0_ref, w1_ref, b1_ref,
               w2_ref, b2_ref, w3_ref, b3_ref, o_ref):
    # x arrives as f32; cast to bf16 in-kernel for the MXU. All matmuls
    # accumulate in f32; bias add + ReLU run in bf16 (cheap VPU epilogue).
    x = x_ref[...].astype(jnp.bfloat16)

    h = jnp.dot(x, w0_ref[...], preferred_element_type=jnp.float32)
    h = jnp.maximum(h.astype(jnp.bfloat16) + b0_ref[...], 0)

    h = jnp.dot(h, w1_ref[...], preferred_element_type=jnp.float32)
    h = jnp.maximum(h.astype(jnp.bfloat16) + b1_ref[...], 0)
    # Dropout(p=0.0) -> identity

    h = jnp.dot(h, w2_ref[...], preferred_element_type=jnp.float32)
    h = jnp.maximum(h.astype(jnp.bfloat16) + b2_ref[...], 0)
    # Dropout(p=0.0) -> identity

    out = jnp.dot(h, w3_ref[...], preferred_element_type=jnp.float32)
    o_ref[...] = out.astype(jnp.bfloat16) + b3_ref[...]


def _round_up(a, m):
    return ((a + m - 1) // m) * m


def _choose_tiling(batch, tb_target=1024, min_split=256):
    """Balanced batch tiling.

    Big tiles amortize the ~0.35us per-grid-step overhead; tiles are rounded
    to 8 sublanes; once the batch is large enough to split we force an even
    number of grid steps so v7x megacore keeps both TensorCores busy.
    """
    n = max(1, pl.cdiv(batch, tb_target))
    if batch >= min_split:
        n = max(n, 2)
        if n % 2:
            n += 1
    tb = _round_up(pl.cdiv(batch, n), 8)
    n = pl.cdiv(batch, tb)
    return tb, n


def init_linear_params(key, in_features, out_features):
    """Deterministic init mimicking torch.nn.Linear default (Kaiming-uniform-ish).
    Weights stored as [in, out] (transposed relative to PyTorch's [out, in])."""
    kw, kb = jax.random.split(key)
    bound = 1.0 / jnp.sqrt(jnp.float32(in_features))
    w = jax.random.uniform(kw, (in_features, out_features), jnp.float32,
                           minval=-bound, maxval=bound)
    b = jax.random.uniform(kb, (1, out_features), jnp.float32,
                           minval=-bound, maxval=bound)
    return w, b


def prepare_params(params):
    """One-time pad/cast of the weights (call once, outside the forward)."""
    (w0, b0), (w1, b1), (w2, b2), (w3, b3) = params
    to_bf16 = lambda a: a.astype(jnp.bfloat16)
    w3_p = jnp.zeros((H2, OUT_PAD), jnp.bfloat16).at[:, :OUT].set(to_bf16(w3))
    b3_p = jnp.zeros((1, OUT_PAD), jnp.bfloat16).at[:, :OUT].set(
        to_bf16(b3).reshape(1, -1))
    return (
        (to_bf16(w0), to_bf16(b0).reshape(1, -1)),
        (to_bf16(w1), to_bf16(b1).reshape(1, -1)),
        (to_bf16(w2), to_bf16(b2).reshape(1, -1)),
        (w3_p, b3_p),
    )


@jax.jit
def mlp_forward(x, prepared_params):
    """x: (B, 1, 28, 28) float32 (NCHW) or already-flat (B, 784)."""
    B = x.shape[0]
    x_flat = x.reshape(B, -1).astype(jnp.float32)
    (w0, b0), (w1, b1), (w2, b2), (w3, b3) = prepared_params

    tb, n_tiles = _choose_tiling(B)

    # Weights / biases: constant index_map -> DMA'd once, resident in VMEM.
    def resident(shape):
        return pl.BlockSpec(shape, lambda i: (0, 0))

    flops = 2 * n_tiles * tb * (IN_FEATURES * H0 + H0 * H1 + H1 * H2 + H2 * OUT_PAD)
    bytes_accessed = (
        x_flat.size * 4
        + (w0.size + w1.size + w2.size + w3.size) * 2
        + (b0.size + b1.size + b2.size + b3.size) * 2
        + B * OUT_PAD * 2)

    out = pl.pallas_call(
        mlp_kernel,
        out_shape=jax.ShapeDtypeStruct((B, OUT_PAD), jnp.bfloat16),
        grid=(n_tiles,),
        in_specs=[
            pl.BlockSpec((tb, IN_FEATURES), lambda i: (i, 0)),  # x: batch-tiled
            resident((IN_FEATURES, H0)), resident((1, H0)),
            resident((H0, H1)), resident((1, H1)),
            resident((H1, H2)), resident((1, H2)),
            resident((H2, OUT_PAD)), resident((1, OUT_PAD)),
        ],
        out_specs=pl.BlockSpec((tb, OUT_PAD), lambda i: (i, 0)),
        compiler_params=pltpu.CompilerParams(
            dimension_semantics=("parallel",),       # megacore sharding on v7x
            vmem_limit_bytes=48 * 1024 * 1024,       # fits TB~1024 on v5e too
        ),
        cost_estimate=pl.CostEstimate(
            flops=flops, transcendentals=0, bytes_accessed=bytes_accessed),
    )(x_flat, w0, b0, w1, b1, w2, b2, w3, b3)

    return out[:, :OUT].astype(jnp.float32)


def mlp_reference_f32(x, params):
    B = x.shape[0]
    h = x.reshape(B, -1)
    (w0, b0), (w1, b1), (w2, b2), (w3, b3) = params
    h = jnp.maximum(h @ w0 + b0, 0.0)
    h = jnp.maximum(h @ w1 + b1, 0.0)
    h = jnp.maximum(h @ w2 + b2, 0.0)
    return h @ w3 + b3


def mlp_reference_mixed(x, params):
    """Same mixed precision as the kernel: bf16 matmul inputs, f32 accumulate,
    bf16 bias add + ReLU epilogue."""
    B = x.shape[0]
    h = x.reshape(B, -1).astype(jnp.bfloat16)
    for idx, (w, b) in enumerate(params):
        y = jnp.dot(h, w.astype(jnp.bfloat16),
                    preferred_element_type=jnp.float32)
        y = y.astype(jnp.bfloat16) + b.astype(jnp.bfloat16)
        h = jnp.maximum(y, 0) if idx < len(params) - 1 else y
    return h.astype(jnp.float32)


if __name__ == "__main__":
    key = jax.random.PRNGKey(0)
    kx, k0, k1, k2, k3 = jax.random.split(key, 5)

    # Small batch, MNIST-shaped input (B, C=1, H=28, W=28) -> flattened to 784.
    B = 2
    x = jax.random.normal(kx, (B, 1, 28, 28), dtype=jnp.float32)

    params = (
        init_linear_params(k0, 28 * 28, 512),
        init_linear_params(k1, 512, 128),
        init_linear_params(k2, 128, 512),
        init_linear_params(k3, 512, 10),
    )
    # One-time weight pad/cast, kept OUT of the per-call jitted forward.
    prepared = prepare_params(params)

    out = mlp_forward(x, prepared)
    out = jax.block_until_ready(out)
    assert out.shape == (B, 10), out.shape

    # Tight check against a reference using the kernel's exact mixed precision.
    ref_mixed = mlp_reference_mixed(x, params)
    assert jnp.allclose(out, ref_mixed, atol=3e-2, rtol=3e-2), \
        "mismatch vs bf16-matched reference"

    # Loose sanity check against the full-f32 reference (catches layout/semantic
    # bugs; tolerance accounts for bf16 matmul inputs and bf16 epilogue).
    ref_f32 = mlp_reference_f32(x, params)
    assert jnp.allclose(out, ref_f32, atol=2e-1, rtol=2e-1), \
        "mismatch vs f32 reference"

    print("KERNEL_OK")
</pallas_src>

<mosaic_0001>
module attributes {stable_mosaic.version = 11 : i64} {
  func.func @mlp_kernel(%arg0: i32, %arg1: memref<8x784xf32, #tpu.memory_space<vmem>>, %arg2: memref<784x512xbf16, #tpu.memory_space<vmem>>, %arg3: memref<1x512xbf16, #tpu.memory_space<vmem>>, %arg4: memref<512x128xbf16, #tpu.memory_space<vmem>>, %arg5: memref<1x128xbf16, #tpu.memory_space<vmem>>, %arg6: memref<128x512xbf16, #tpu.memory_space<vmem>>, %arg7: memref<1x512xbf16, #tpu.memory_space<vmem>>, %arg8: memref<512x128xbf16, #tpu.memory_space<vmem>>, %arg9: memref<1x128xbf16, #tpu.memory_space<vmem>>, %arg10: memref<8x128xbf16, #tpu.memory_space<vmem>>) attributes {dimension_semantics = [#tpu.dimension_semantics<parallel>], iteration_bounds = array<i64: 1>, scalar_prefetch = 0 : i64, scratch_operands = 0 : i64, tpu.core_type = #tpu.core_type<tc>, window_params = [{transform_indices = @transform_0, window_bounds = array<i64: 8, 784>}, {pipeline_mode = #tpu.pipeline_mode<synchronous>, transform_indices = @transform_1, window_bounds = array<i64: 784, 512>}, {pipeline_mode = #tpu.pipeline_mode<synchronous>, transform_indices = @transform_2, window_bounds = array<i64: 1, 512>}, {pipeline_mode = #tpu.pipeline_mode<synchronous>, transform_indices = @transform_3, window_bounds = array<i64: 512, 128>}, {pipeline_mode = #tpu.pipeline_mode<synchronous>, transform_indices = @transform_4, window_bounds = array<i64: 1, 128>}, {pipeline_mode = #tpu.pipeline_mode<synchronous>, transform_indices = @transform_5, window_bounds = array<i64: 128, 512>}, {pipeline_mode = #tpu.pipeline_mode<synchronous>, transform_indices = @transform_6, window_bounds = array<i64: 1, 512>}, {pipeline_mode = #tpu.pipeline_mode<synchronous>, transform_indices = @transform_7, window_bounds = array<i64: 512, 128>}, {pipeline_mode = #tpu.pipeline_mode<synchronous>, transform_indices = @transform_8, window_bounds = array<i64: 1, 128>}, {transform_indices = @transform_9, window_bounds = array<i64: 8, 128>}]} {
    %c0 = arith.constant 0 : index
    %c0_0 = arith.constant 0 : index
    %0 = vector.load %arg1[%c0, %c0_0] : memref<8x784xf32, #tpu.memory_space<vmem>>, vector<8x784xf32>
    %1 = arith.truncf %0 : vector<8x784xf32> to vector<8x784xbf16>
    %c0_1 = arith.constant 0 : index
    %c0_2 = arith.constant 0 : index
    %2 = vector.load %arg2[%c0_1, %c0_2] : memref<784x512xbf16, #tpu.memory_space<vmem>>, vector<784x512xbf16>
    %cst = arith.constant dense<0.000000e+00> : vector<8x512xf32>
    %3 = tpu.matmul %1, %2, %cst {dimension_numbers = #tpu.dot_dimension_numbers<[1], [0], [0], [1], [0, 0, 1, 1], [], []>} : vector<8x784xbf16>, vector<784x512xbf16>, vector<8x512xf32> -> vector<8x512xf32>
    %4 = arith.truncf %3 : vector<8x512xf32> to vector<8x512xbf16>
    %c0_3 = arith.constant 0 : index
    %c0_4 = arith.constant 0 : index
    %5 = vector.load %arg3[%c0_3, %c0_4] : memref<1x512xbf16, #tpu.memory_space<vmem>>, vector<1x512xbf16>
    %6 = vector.broadcast %5 : vector<1x512xbf16> to vector<8x512xbf16>
    %7 = arith.addf %4, %6 : vector<8x512xbf16>
    %cst_5 = arith.constant 0.000000e+00 : bf16
    %8 = vector.broadcast %cst_5 : bf16 to vector<8x512xbf16>
    %9 = arith.maximumf %7, %8 : vector<8x512xbf16>
    %c0_6 = arith.constant 0 : index
    %c0_7 = arith.constant 0 : index
    %10 = vector.load %arg4[%c0_6, %c0_7] : memref<512x128xbf16, #tpu.memory_space<vmem>>, vector<512x128xbf16>
    %cst_8 = arith.constant dense<0.000000e+00> : vector<8x128xf32>
    %11 = tpu.matmul %9, %10, %cst_8 {dimension_numbers = #tpu.dot_dimension_numbers<[1], [0], [0], [1], [0, 0, 1, 1], [], []>} : vector<8x512xbf16>, vector<512x128xbf16>, vector<8x128xf32> -> vector<8x128xf32>
    %12 = arith.truncf %11 : vector<8x128xf32> to vector<8x128xbf16>
    %c0_9 = arith.constant 0 : index
    %c0_10 = arith.constant 0 : index
    %13 = vector.load %arg5[%c0_9, %c0_10] : memref<1x128xbf16, #tpu.memory_space<vmem>>, vector<1x128xbf16>
    %14 = vector.broadcast %13 : vector<1x128xbf16> to vector<8x128xbf16>
    %15 = arith.addf %12, %14 : vector<8x128xbf16>
    %cst_11 = arith.constant 0.000000e+00 : bf16
    %16 = vector.broadcast %cst_11 : bf16 to vector<8x128xbf16>
    %17 = arith.maximumf %15, %16 : vector<8x128xbf16>
    %c0_12 = arith.constant 0 : index
    %c0_13 = arith.constant 0 : index
    %18 = vector.load %arg6[%c0_12, %c0_13] : memref<128x512xbf16, #tpu.memory_space<vmem>>, vector<128x512xbf16>
    %cst_14 = arith.constant dense<0.000000e+00> : vector<8x512xf32>
    %19 = tpu.matmul %17, %18, %cst_14 {dimension_numbers = #tpu.dot_dimension_numbers<[1], [0], [0], [1], [0, 0, 1, 1], [], []>} : vector<8x128xbf16>, vector<128x512xbf16>, vector<8x512xf32> -> vector<8x512xf32>
    %20 = arith.truncf %19 : vector<8x512xf32> to vector<8x512xbf16>
    %c0_15 = arith.constant 0 : index
    %c0_16 = arith.constant 0 : index
    %21 = vector.load %arg7[%c0_15, %c0_16] : memref<1x512xbf16, #tpu.memory_space<vmem>>, vector<1x512xbf16>
    %22 = vector.broadcast %21 : vector<1x512xbf16> to vector<8x512xbf16>
    %23 = arith.addf %20, %22 : vector<8x512xbf16>
    %cst_17 = arith.constant 0.000000e+00 : bf16
    %24 = vector.broadcast %cst_17 : bf16 to vector<8x512xbf16>
    %25 = arith.maximumf %23, %24 : vector<8x512xbf16>
    %c0_18 = arith.constant 0 : index
    %c0_19 = arith.constant 0 : index
    %26 = vector.load %arg8[%c0_18, %c0_19] : memref<512x128xbf16, #tpu.memory_space<vmem>>, vector<512x128xbf16>
    %cst_20 = arith.constant dense<0.000000e+00> : vector<8x128xf32>
    %27 = tpu.matmul %25, %26, %cst_20 {dimension_numbers = #tpu.dot_dimension_numbers<[1], [0], [0], [1], [0, 0, 1, 1], [], []>} : vector<8x512xbf16>, vector<512x128xbf16>, vector<8x128xf32> -> vector<8x128xf32>
    %28 = arith.truncf %27 : vector<8x128xf32> to vector<8x128xbf16>
    %c0_21 = arith.constant 0 : index
    %c0_22 = arith.constant 0 : index
    %29 = vector.load %arg9[%c0_21, %c0_22] : memref<1x128xbf16, #tpu.memory_space<vmem>>, vector<1x128xbf16>
    %30 = vector.broadcast %29 : vector<1x128xbf16> to vector<8x128xbf16>
    %31 = arith.addf %28, %30 : vector<8x128xbf16>
    %c0_23 = arith.constant 0 : index
    %c0_24 = arith.constant 0 : index
    %32 = vector.load %arg10[%c0_23, %c0_24] : memref<8x128xbf16, #tpu.memory_space<vmem>>, vector<8x128xbf16>
    tpu.vector_store %arg10[%c0_23, %c0_24], %31 {strides = array<i32>} : memref<8x128xbf16, #tpu.memory_space<vmem>>, vector<8x128xbf16>,
    return
  }
  func.func @transform_0(%arg0: i32) -> (i32, i32) {
    %c0_i32 = arith.constant 0 : i32
    %c0_i32_0 = arith.constant 0 : i32
    return %arg0, %c0_i32 : i32, i32
  }
  func.func @transform_1(%arg0: i32) -> (i32, i32) {
    %c0_i32 = arith.constant 0 : i32
    %c0_i32_0 = arith.constant 0 : i32
    %c0_i32_1 = arith.constant 0 : i32
    return %c0_i32, %c0_i32_0 : i32, i32
  }
  func.func @transform_2(%arg0: i32) -> (i32, i32) {
    %c0_i32 = arith.constant 0 : i32
    %c0_i32_0 = arith.constant 0 : i32
    %c0_i32_1 = arith.constant 0 : i32
    return %c0_i32, %c0_i32_0 : i32, i32
  }
  func.func @transform_3(%arg0: i32) -> (i32, i32) {
    %c0_i32 = arith.constant 0 : i32
    %c0_i32_0 = arith.constant 0 : i32
    %c0_i32_1 = arith.constant 0 : i32
    return %c0_i32, %c0_i32_0 : i32, i32
  }
  func.func @transform_4(%arg0: i32) -> (i32, i32) {
    %c0_i32 = arith.constant 0 : i32
    %c0_i32_0 = arith.constant 0 : i32
    %c0_i32_1 = arith.constant 0 : i32
    return %c0_i32, %c0_i32_0 : i32, i32
  }
  func.func @transform_5(%arg0: i32) -> (i32, i32) {
    %c0_i32 = arith.constant 0 : i32
    %c0_i32_0 = arith.constant 0 : i32
    %c0_i32_1 = arith.constant 0 : i32
    return %c0_i32, %c0_i32_0 : i32, i32
  }
  func.func @transform_6(%arg0: i32) -> (i32, i32) {
    %c0_i32 = arith.constant 0 : i32
    %c0_i32_0 = arith.constant 0 : i32
    %c0_i32_1 = arith.constant 0 : i32
    return %c0_i32, %c0_i32_0 : i32, i32
  }
  func.func @transform_7(%arg0: i32) -> (i32, i32) {
    %c0_i32 = arith.constant 0 : i32
    %c0_i32_0 = arith.constant 0 : i32
    %c0_i32_1 = arith.constant 0 : i32
    return %c0_i32, %c0_i32_0 : i32, i32
  }
  func.func @transform_8(%arg0: i32) -> (i32, i32) {
    %c0_i32 = arith.constant 0 : i32
    %c0_i32_0 = arith.constant 0 : i32
    %c0_i32_1 = arith.constant 0 : i32
    return %c0_i32, %c0_i32_0 : i32, i32
  }
  func.func @transform_9(%arg0: i32) -> (i32, i32) {
    %c0_i32 = arith.constant 0 : i32
    %c0_i32_0 = arith.constant 0 : i32
    return %arg0, %c0_i32 : i32, i32
  }
}

</mosaic_0001>

<llo_original>
// kernel: mlp_forward.1
$region0: #{mlp_forward.1}
  #allocation0 [shape = 'u32[]', space=smem, size = 0x4, offset = 0x4, fixed_abs, tag = 'smem constant byte address 0x4 - core index']
  #allocation1 [shape = 'u32[144,128]{1,0:T(1,128)}', space=vmem, size = 0x12000, scoped, tag = 'internal scratch']
  %s0 = inlined_call_operand.vmem [shape: f32[2,784], index: 0, kind: input, shape index: {}]
  %s1 = inlined_call_operand.hbm [shape: bf16[784,512], index: 1, kind: input, shape index: {}]
  %s2 = inlined_call_operand.vmem [shape: bf16[1,512], index: 2, kind: input, shape index: {}]
  %s3 = inlined_call_operand.hbm [shape: bf16[512,128], index: 3, kind: input, shape index: {}]
  %s4 = inlined_call_operand.vmem [shape: bf16[1,128], index: 4, kind: input, shape index: {}]
  %s5 = inlined_call_operand.hbm [shape: bf16[128,512], index: 5, kind: input, shape index: {}]
  %s6 = inlined_call_operand.vmem [shape: bf16[1,512], index: 6, kind: input, shape index: {}]
  %s7 = inlined_call_operand.hbm [shape: bf16[512,128], index: 7, kind: input, shape index: {}]
  %s8 = inlined_call_operand.vmem [shape: bf16[1,128], index: 8, kind: input, shape index: {}]
  %s9 = inlined_call_operand.vmem [shape: bf16[2,128], index: 9, kind: output, shape index: {}]
  %s10 = sld [smem:[#allocation0]]
  $region92: #{mlp_forward.1} parent=0
    _
  %s12 = ssub.s32 1, %s10
  %s13 = scalar_select 0, %s12, %s10
  $region1: #{mlp_forward.1} parent=0
    #allocation2 [shape = 'u8[802816]{0}', space=vmem, size = 0xc4000, scoped, tag = 'input window, operand 1, single buffered']
    #allocation3 [shape = 's32[1]{0}', space=sflag, size = 0x4, scoped, tag = 'scoped memory for mlp_forward.1']
    #allocation4 [shape = 'u8[131072]{0}', space=vmem, size = 0x20000, scoped, tag = 'input window, operand 3, single buffered']
    #allocation5 [shape = 's32[1]{0}', space=sflag, size = 0x4, scoped, tag = 'scoped memory for mlp_forward.1']
    #allocation6 [shape = 'u8[131072]{0}', space=vmem, size = 0x20000, scoped, tag = 'input window, operand 5, single buffered']
    #allocation7 [shape = 'u8[131072]{0}', space=vmem, size = 0x20000, scoped, tag = 'input window, operand 7, single buffered']
    #allocation8 [shape = 's32[1]{0}', space=sflag, size = 0x4, scoped, tag = 'scoped memory for mlp_forward.1']
    #allocation9 [shape = 'u8[2048]{0}', space=vmem, size = 0x800, scoped, tag = 'output window, operand 0, single buffered']
    %14 = vsyncpa [#allocation3], 0
    %15 = vsyncpa [#allocation5], 0
    %16 = vsyncpa [#allocation8], 0
    // Predicated region
    $region2: #{mlp_forward.1} parent=1 // pred_check
      _
    $region3: #{mlp_forward.1} parent=1 // pred_check_branch
      %18 = sbr.rel (0) target = $region5
    $region4: #{mlp_forward.1} parent=1 // pred_region
      _
    $region5: #{mlp_forward.1} parent=1 // pred_fallthru
      _
    // Predicated region
    $region6: #{mlp_forward.1} parent=1 // pred_check
      _
    $region7: #{mlp_forward.1} parent=1 // pred_check_branch
      %20 = sbr.rel (0) target = $region9
    $region8: #{mlp_forward.1} parent=1 // pred_region
      %s22 = ssub.s32 25088, 25088
      %23 = vsyncadd [#allocation3], %s22
      %s24 = sshll.u32 [#allocation2], 4
      %s25 = int_to_ptr.vmem [resolvable:$true] %s24
      %30 = dma.hbm_to_vmem [thread:$0]  %s1, 25088, %s25, [#allocation3], 256, 256, 16
    $region9: #{mlp_forward.1} parent=1 // pred_fallthru
      _
    // Predicated region
    $region10: #{mlp_forward.1} parent=1 // pred_check
      _
    $region11: #{mlp_forward.1} parent=1 // pred_check_branch
      %32 = sbr.rel (0) target = $region13
    $region12: #{mlp_forward.1} parent=1 // pred_region
      _
    $region13: #{mlp_forward.1} parent=1 // pred_fallthru
      _
    // Predicated region
    $region14: #{mlp_forward.1} parent=1 // pred_check
      _
    $region15: #{mlp_forward.1} parent=1 // pred_check_branch
      %34 = sbr.rel (0) target = $region17
    $region16: #{mlp_forward.1} parent=1 // pred_region
      %s36 = ssub.s32 4096, 4096
      %37 = vsyncadd [#allocation5], %s36
      %s38 = sshll.u32 [#allocation4], 4
      %s39 = int_to_ptr.vmem [resolvable:$true] %s38
      %44 = dma.hbm_to_vmem [thread:$0]  %s3, 4096, %s39, [#allocation5], 64, 64, 4
    $region17: #{mlp_forward.1} parent=1 // pred_fallthru
      _
    // Predicated region
    $region18: #{mlp_forward.1} parent=1 // pred_check
      _
    $region19: #{mlp_forward.1} parent=1 // pred_check_branch
      %46 = sbr.rel (0) target = $region21
    $region20: #{mlp_forward.1} parent=1 // pred_region
      _
    $region21: #{mlp_forward.1} parent=1 // pred_fallthru
      _
    // Predicated region
    $region22: #{mlp_forward.1} parent=1 // pred_check
      _
    $region23: #{mlp_forward.1} parent=1 // pred_check_branch
      %48 = sbr.rel (0) target = $region25
    $region24: #{mlp_forward.1} parent=1 // pred_region
      %s50 = ssub.s32 4096, 4096
      %51 = vsyncadd [#allocation5], %s50
      %s52 = sshll.u32 [#allocation6], 4
      %s53 = int_to_ptr.vmem [resolvable:$true] %s52
      %58 = dma.hbm_to_vmem [thread:$0]  %s5, 4096, %s53, [#allocation5], 256, 256, 16
    $region25: #{mlp_forward.1} parent=1 // pred_fallthru
      _
    // Predicated region
    $region26: #{mlp_forward.1} parent=1 // pred_check
      _
    $region27: #{mlp_forward.1} parent=1 // pred_check_branch
      %60 = sbr.rel (0) target = $region29
    $region28: #{mlp_forward.1} parent=1 // pred_region
      _
    $region29: #{mlp_forward.1} parent=1 // pred_fallthru
      _
    // Predicated region
    $region30: #{mlp_forward.1} parent=1 // pred_check
      _
    $region31: #{mlp_forward.1} parent=1 // pred_check_branch
      %62 = sbr.rel (0) target = $region33
    $region32: #{mlp_forward.1} parent=1 // pred_region
      %s64 = ssub.s32 4096, 4096
      %65 = vsyncadd [#allocation8], %s64
      %s66 = sshll.u32 [#allocation7], 4
      %s67 = int_to_ptr.vmem [resolvable:$true] %s66
      %72 = dma.hbm_to_vmem [thread:$0]  %s7, 4096, %s67, [#allocation8], 64, 64, 4
    $region33: #{mlp_forward.1} parent=1 // pred_fallthru
      _
    // Predicated region
    $region34: #{mlp_forward.1} parent=1 // pred_check
      _
    $region35: #{mlp_forward.1} parent=1 // pred_check_branch
      %74 = sbr.rel (0) target = $region37
    $region36: #{mlp_forward.1} parent=1 // pred_region
      _
    $region37: #{mlp_forward.1} parent=1 // pred_fallthru
      _
    // Predicated region
    $region38: #{mlp_forward.1} parent=1 // pred_check
      _
    $region39: #{mlp_forward.1} parent=1 // pred_check_branch
      %76 = sbr.rel (0) target = $region41
    $region40: #{mlp_forward.1} parent=1 // pred_region
      %77 = dma.done [#allocation3], 25088
    $region41: #{mlp_forward.1} parent=1 // pred_fallthru
      _
    // Predicated region
    $region42: #{mlp_forward.1} parent=1 // pred_check
      _
    $region43: #{mlp_forward.1} parent=1 // pred_check_branch
      %79 = sbr.rel (0) target = $region45
    $region44: #{mlp_forward.1} parent=1 // pred_region
      %80 = dma.done [#allocation5], 4096
    $region45: #{mlp_forward.1} parent=1 // pred_fallthru
      _
    // Predicated region
    $region46: #{mlp_forward.1} parent=1 // pred_check
      _
    $region47: #{mlp_forward.1} parent=1 // pred_check_branch
      %82 = sbr.rel (0) target = $region49
    $region48: #{mlp_forward.1} parent=1 // pred_region
      %83 = dma.done [#allocation5], 4096
    $region49: #{mlp_forward.1} parent=1 // pred_fallthru
      _
    // Predicated region
    $region50: #{mlp_forward.1} parent=1 // pred_check
      _
    $region51: #{mlp_forward.1} parent=1 // pred_check_branch
      %85 = sbr.rel (0) target = $region53
    $region52: #{mlp_forward.1} parent=1 // pred_region
      %86 = dma.done [#allocation8], 4096
    $region53: #{mlp_forward.1} parent=1 // pred_fallthru
      _
    %v88 = vld [vmem:[%s0] sm:$0xff]
    %v89 = vld [vmem:[%s0 + $0x8] sm:$0x3f]
    %v90 = vld [vmem:[%s0 + $0xe] sm:$0xff]
    %v91 = vld [vmem:[%s0 + $0x16] sm:$0x3f]
    %v92 = vld [vmem:[%s0 + $0x1c] sm:$0xff]
    %v93 = vld [vmem:[%s0 + $0x24] sm:$0x3f]
    %v94 = vld [vmem:[%s0 + $0x2a] sm:$0xff]
    %v95 = vld [vmem:[%s0 + $0x32] sm:$0x3f]
    %v104 = vcombine.low %v88, %v90
    %v105 = vcombine.high %v88, %v90
    %v106 = vcombine.low %v92, %v94
    %v107 = vcombine.high %v92, %v94
    %v109 = vunpack.c.l.s4 1983009808
    %v110 = vunpack.c.0.s8 %v109
    %v111 = vlaneseq
    %v112 = vshrl.u32 %v111, 7
    %v113 = vsub.s32 %v110, %v112
    %v114 = vrot.slane %v104, %v113
    %v116 = vunpack.c.l.s4 1983009808
    %v117 = vunpack.c.0.s8 %v116
    %v118 = vlaneseq
    %v119 = vshrl.u32 %v118, 7
    %v120 = vsub.s32 %v117, %v119
    %v121 = vrot.slane %v105, %v120
    %v123 = vunpack.c.l.s4 1983009808
    %v124 = vunpack.c.0.s8 %v123
    %v125 = vlaneseq
    %v126 = vshrl.u32 %v125, 7
    %v127 = vsub.s32 %v124, %v126
    %v128 = vrot.slane %v106, %v127
    %v130 = vunpack.c.l.s4 1983009808
    %v131 = vunpack.c.0.s8 %v130
    %v132 = vlaneseq
    %v133 = vshrl.u32 %v132, 7
    %v134 = vsub.s32 %v131, %v133
    %v135 = vrot.slane %v107, %v134
    %v136 = vcombine.low %v114, %v128
    %v137 = vcombine.high %v114, %v128
    %v138 = vcombine.low %v121, %v135
    %v139 = vcombine.high %v121, %v135
    %v140 = vcombine.low %v89, %v91
    %v141 = vcombine.high %v89, %v91
    %v142 = vcombine.low %v93, %v95
    %v143 = vcombine.high %v93, %v95
    %v145 = vunpack.c.l.s4 1983009808
    %v146 = vunpack.c.0.s8 %v145
    %v147 = vlaneseq
    %v148 = vshrl.u32 %v147, 7
    %v149 = vsub.s32 %v146, %v148
    %v150 = vrot.slane %v140, %v149
    %v152 = vunpack.c.l.s4 1983009808
    %v153 = vunpack.c.0.s8 %v152
    %v154 = vlaneseq
    %v155 = vshrl.u32 %v154, 7
    %v156 = vsub.s32 %v153, %v155
    %v157 = vrot.slane %v141, %v156
    %v159 = vunpack.c.l.s4 1983009808
    %v160 = vunpack.c.0.s8 %v159
    %v161 = vlaneseq
    %v162 = vshrl.u32 %v161, 7
    %v163 = vsub.s32 %v160, %v162
    %v164 = vrot.slane %v142, %v163
    %v166 = vunpack.c.l.s4 1983009808
    %v167 = vunpack.c.0.s8 %v166
    %v168 = vlaneseq
    %v169 = vshrl.u32 %v168, 7
    %v170 = vsub.s32 %v167, %v169
    %v171 = vrot.slane %v143, %v170
    %v172 = vcombine.low %v150, %v164
    %v173 = vcombine.high %v150, %v164
    %v174 = vcombine.low %v157, %v171
    %v182 = vpack.c.bf16 %v136, %v136
    %v183 = vpack.c.bf16 %v137, %v137
    %v184 = vpack.c.bf16 %v138, %v138
    %v185 = vpack.c.bf16 %v139, %v139
    %v186 = vpack.c.bf16 %v172, %v172
    %v187 = vpack.c.bf16 %v173, %v173
    %v188 = vpack.c.bf16 %v174, %v174
    %v189 = vld [vmem:[#allocation2] sm:$0xff]
    %v190 = vld [vmem:[#allocation2 + $0x8] sm:$0xff]
    %v191 = vld [vmem:[#allocation2 + $0x10] sm:$0xff]
    %v192 = vld [vmem:[#allocation2 + $0x18] sm:$0xff]
    %v193 = vld [vmem:[#allocation2 + $0x20] sm:$0xff]
    %v194 = vld [vmem:[#allocation2 + $0x28] sm:$0xff]
    %v195 = vld [vmem:[#allocation2 + $0x30] sm:$0xff]
    %v196 = vld [vmem:[#allocation2 + $0x38] sm:$0xff]
    %v197 = vld [vmem:[#allocation2 + $0x40] sm:$0xff]
    %v198 = vld [vmem:[#allocation2 + $0x48] sm:$0xff]
    %v199 = vld [vmem:[#allocation2 + $0x50] sm:$0xff]
    %v200 = vld [vmem:[#allocation2 + $0x58] sm:$0xff]
    %v201 = vld [vmem:[#allocation2 + $0x60] sm:$0xff]
    %v202 = vld [vmem:[#allocation2 + $0x68] sm:$0xff]
    %v203 = vld [vmem:[#allocation2 + $0x70] sm:$0xff]
    %v204 = vld [vmem:[#allocation2 + $0x78] sm:$0xff]
    %v205 = vld [vmem:[#allocation2 + $0x80] sm:$0xff]
    %v206 = vld [vmem:[#allocation2 + $0x88] sm:$0xff]
    %v207 = vld [vmem:[#allocation2 + $0x90] sm:$0xff]
    %v208 = vld [vmem:[#allocation2 + $0x98] sm:$0xff]
    %v209 = vld [vmem:[#allocation2 + $0xa0] sm:$0xff]
    %v210 = vld [vmem:[#allocation2 + $0xa8] sm:$0xff]
    %v211 = vld [vmem:[#allocation2 + $0xb0] sm:$0xff]
    %v212 = vld [vmem:[#allocation2 + $0xb8] sm:$0xff]
    %v213 = vld [vmem:[#allocation2 + $0xc0] sm:$0xff]
    %v214 = vld [vmem:[#allocation2 + $0xc8] sm:$0xff]
    %v215 = vld [vmem:[#allocation2 + $0xd0] sm:$0xff]
    %v216 = vld [vmem:[#allocation2 + $0xd8] sm:$0xff]
    %v217 = vld [vmem:[#allocation2 + $0xe0] sm:$0xff]
    %v218 = vld [vmem:[#allocation2 + $0xe8] sm:$0xff]
    %v219 = vld [vmem:[#allocation2 + $0xf0] sm:$0xff]
    %v220 = vld [vmem:[#allocation2 + $0xf8] sm:$0xff]
    %v221 = vld [vmem:[#allocation2 + $0x100] sm:$0xff]
    %v222 = vld [vmem:[#allocation2 + $0x108] sm:$0xff]
    %v223 = vld [vmem:[#allocation2 + $0x110] sm:$0xff]
    %v224 = vld [vmem:[#allocation2 + $0x118] sm:$0xff]
    %v225 = vld [vmem:[#allocation2 + $0x120] sm:$0xff]
    %v226 = vld [vmem:[#allocation2 + $0x128] sm:$0xff]
    %v227 = vld [vmem:[#allocation2 + $0x130] sm:$0xff]
    %v228 = vld [vmem:[#allocation2 + $0x138] sm:$0xff]
    %v229 = vld [vmem:[#allocation2 + $0x140] sm:$0xff]
    %v230 = vld [vmem:[#allocation2 + $0x148] sm:$0xff]
    %v231 = vld [vmem:[#allocation2 + $0x150] sm:$0xff]
    %v232 = vld [vmem:[#allocation2 + $0x158] sm:$0xff]
    %v233 = vld [vmem:[#allocation2 + $0x160] sm:$0xff]
    %v234 = vld [vmem:[#allocation2 + $0x168] sm:$0xff]
    %v235 = vld [vmem:[#allocation2 + $0x170] sm:$0xff]
    %v236 = vld [vmem:[#allocation2 + $0x178] sm:$0xff]
    %v237 = vld [vmem:[#allocation2 + $0x180] sm:$0xff]
    %v238 = vld [vmem:[#allocation2 + $0x188] sm:$0xff]
    %v239 = vld [vmem:[#allocation2 + $0x190] sm:$0xff]
    %v240 = vld [vmem:[#allocation2 + $0x198] sm:$0xff]
    %v241 = vld [vmem:[#allocation2 + $0x1a0] sm:$0xff]
    %v242 = vld [vmem:[#allocation2 + $0x1a8] sm:$0xff]
    %v243 = vld [vmem:[#allocation2 + $0x1b0] sm:$0xff]
    %v244 = vld [vmem:[#allocation2 + $0x1b8] sm:$0xff]
    %v245 = vld [vmem:[#allocation2 + $0x1c0] sm:$0xff]
    %v246 = vld [vmem:[#allocation2 + $0x1c8] sm:$0xff]
    %v247 = vld [vmem:[#allocation2 + $0x1d0] sm:$0xff]
    %v248 = vld [vmem:[#allocation2 + $0x1d8] sm:$0xff]
    %v249 = vld [vmem:[#allocation2 + $0x1e0] sm:$0xff]
    %v250 = vld [vmem:[#allocation2 + $0x1e8] sm:$0xff]
    %v251 = vld [vmem:[#allocation2 + $0x1f0] sm:$0xff]
    %v252 = vld [vmem:[#allocation2 + $0x1f8] sm:$0xff]
    %v253 = vld [vmem:[#allocation2 + $0x200] sm:$0xff]
    %v254 = vld [vmem:[#allocation2 + $0x208] sm:$0xff]
    %v255 = vld [vmem:[#allocation2 + $0x210] sm:$0xff]
    %v256 = vld [vmem:[#allocation2 + $0x218] sm:$0xff]
    %v257 = vld [vmem:[#allocation2 + $0x220] sm:$0xff]
    %v258 = vld [vmem:[#allocation2 + $0x228] sm:$0xff]
    %v259 = vld [vmem:[#allocation2 + $0x230] sm:$0xff]
    %v260 = vld [vmem:[#allocation2 + $0x238] sm:$0xff]
    %v261 = vld [vmem:[#allocation2 + $0x240] sm:$0xff]
    %v262 = vld [vmem:[#allocation2 + $0x248] sm:$0xff]
    %v263 = vld [vmem:[#allocation2 + $0x250] sm:$0xff]
    %v264 = vld [vmem:[#allocation2 + $0x258] sm:$0xff]
    %v265 = vld [vmem:[#allocation2 + $0x260] sm:$0xff]
    %v266 = vld [vmem:[#allocation2 + $0x268] sm:$0xff]
    %v267 = vld [vmem:[#allocation2 + $0x270] sm:$0xff]
    %v268 = vld [vmem:[#allocation2 + $0x278] sm:$0xff]
    %v269 = vld [vmem:[#allocation2 + $0x280] sm:$0xff]
    %v270 = vld [vmem:[#allocation2 + $0x288] sm:$0xff]
    %v271 = vld [vmem:[#allocation2 + $0x290] sm:$0xff]
    %v272 = vld [vmem:[#allocation2 + $0x298] sm:$0xff]
    %v273 = vld [vmem:[#allocation2 + $0x2a0] sm:$0xff]
    %v274 = vld [vmem:[#allocation2 + $0x2a8] sm:$0xff]
    %v275 = vld [vmem:[#allocation2 + $0x2b0] sm:$0xff]
    %v276 = vld [vmem:[#allocation2 + $0x2b8] sm:$0xff]
    %v277 = vld [vmem:[#allocation2 + $0x2c0] sm:$0xff]
    %v278 = vld [vmem:[#allocation2 + $0x2c8] sm:$0xff]
    %v279 = vld [vmem:[#allocation2 + $0x2d0] sm:$0xff]
    %v280 = vld [vmem:[#allocation2 + $0x2d8] sm:$0xff]
    %v281 = vld [vmem:[#allocation2 + $0x2e0] sm:$0xff]
    %v282 = vld [vmem:[#allocation2 + $0x2e8] sm:$0xff]
    %v283 = vld [vmem:[#allocation2 + $0x2f0] sm:$0xff]
    %v284 = vld [vmem:[#allocation2 + $0x2f8] sm:$0xff]
    %v285 = vld [vmem:[#allocation2 + $0x300] sm:$0xff]
    %v286 = vld [vmem:[#allocation2 + $0x308] sm:$0xff]
    %v287 = vld [vmem:[#allocation2 + $0x310] sm:$0xff]
    %v288 = vld [vmem:[#allocation2 + $0x318] sm:$0xff]
    %v289 = vld [vmem:[#allocation2 + $0x320] sm:$0xff]
    %v290 = vld [vmem:[#allocation2 + $0x328] sm:$0xff]
    %v291 = vld [vmem:[#allocation2 + $0x330] sm:$0xff]
    %v292 = vld [vmem:[#allocation2 + $0x338] sm:$0xff]
    %v293 = vld [vmem:[#allocation2 + $0x340] sm:$0xff]
    %v294 = vld [vmem:[#allocation2 + $0x348] sm:$0xff]
    %v295 = vld [vmem:[#allocation2 + $0x350] sm:$0xff]
    %v296 = vld [vmem:[#allocation2 + $0x358] sm:$0xff]
    %v297 = vld [vmem:[#allocation2 + $0x360] sm:$0xff]
    %v298 = vld [vmem:[#allocation2 + $0x368] sm:$0xff]
    %v299 = vld [vmem:[#allocation2 + $0x370] sm:$0xff]
    %v300 = vld [vmem:[#allocation2 + $0x378] sm:$0xff]
    %v301 = vld [vmem:[#allocation2 + $0x380] sm:$0xff]
    %v302 = vld [vmem:[#allocation2 + $0x388] sm:$0xff]
    %v303 = vld [vmem:[#allocation2 + $0x390] sm:$0xff]
    %v304 = vld [vmem:[#allocation2 + $0x398] sm:$0xff]
    %v305 = vld [vmem:[#allocation2 + $0x3a0] sm:$0xff]
    %v306 = vld [vmem:[#allocation2 + $0x3a8] sm:$0xff]
    %v307 = vld [vmem:[#allocation2 + $0x3b0] sm:$0xff]
    %v308 = vld [vmem:[#allocation2 + $0x3b8] sm:$0xff]
    %v309 = vld [vmem:[#allocation2 + $0x3c0] sm:$0xff]
    %v310 = vld [vmem:[#allocation2 + $0x3c8] sm:$0xff]
    %v311 = vld [vmem:[#allocation2 + $0x3d0] sm:$0xff]
    %v312 = vld [vmem:[#allocation2 + $0x3d8] sm:$0xff]
    %v313 = vld [vmem:[#allocation2 + $0x3e0] sm:$0xff]
    %v314 = vld [vmem:[#allocation2 + $0x3e8] sm:$0xff]
    %v315 = vld [vmem:[#allocation2 + $0x3f0] sm:$0xff]
    %v316 = vld [vmem:[#allocation2 + $0x3f8] sm:$0xff]
    %v317 = vld [vmem:[#allocation2 + $0x400] sm:$0xff]
    %v318 = vld [vmem:[#allocation2 + $0x408] sm:$0xff]
    %v319 = vld [vmem:[#allocation2 + $0x410] sm:$0xff]
    %v320 = vld [vmem:[#allocation2 + $0x418] sm:$0xff]
    %v321 = vld [vmem:[#allocation2 + $0x420] sm:$0xff]
    %v322 = vld [vmem:[#allocation2 + $0x428] sm:$0xff]
    %v323 = vld [vmem:[#allocation2 + $0x430] sm:$0xff]
    %v324 = vld [vmem:[#allocation2 + $0x438] sm:$0xff]
    %v325 = vld [vmem:[#allocation2 + $0x440] sm:$0xff]
    %v326 = vld [vmem:[#allocation2 + $0x448] sm:$0xff]
    %v327 = vld [vmem:[#allocation2 + $0x450] sm:$0xff]
    %v328 = vld [vmem:[#allocation2 + $0x458] sm:$0xff]
    %v329 = vld [vmem:[#allocation2 + $0x460] sm:$0xff]
    %v330 = vld [vmem:[#allocation2 + $0x468] sm:$0xff]
    %v331 = vld [vmem:[#allocation2 + $0x470] sm:$0xff]
    %v332 = vld [vmem:[#allocation2 + $0x478] sm:$0xff]
    %v333 = vld [vmem:[#allocation2 + $0x480] sm:$0xff]
    %v334 = vld [vmem:[#allocation2 + $0x488] sm:$0xff]
    %v335 = vld [vmem:[#allocation2 + $0x490] sm:$0xff]
    %v336 = vld [vmem:[#allocation2 + $0x498] sm:$0xff]
    %v337 = vld [vmem:[#allocation2 + $0x4a0] sm:$0xff]
    %v338 = vld [vmem:[#allocation2 + $0x4a8] sm:$0xff]
    %v339 = vld [vmem:[#allocation2 + $0x4b0] sm:$0xff]
    %v340 = vld [vmem:[#allocation2 + $0x4b8] sm:$0xff]
    %v341 = vld [vmem:[#allocation2 + $0x4c0] sm:$0xff]
    %v342 = vld [vmem:[#allocation2 + $0x4c8] sm:$0xff]
    %v343 = vld [vmem:[#allocation2 + $0x4d0] sm:$0xff]
    %v344 = vld [vmem:[#allocation2 + $0x4d8] sm:$0xff]
    %v345 = vld [vmem:[#allocation2 + $0x4e0] sm:$0xff]
    %v346 = vld [vmem:[#allocation2 + $0x4e8] sm:$0xff]
    %v347 = vld [vmem:[#allocation2 + $0x4f0] sm:$0xff]
    %v348 = vld [vmem:[#allocation2 + $0x4f8] sm:$0xff]
    %v349 = vld [vmem:[#allocation2 + $0x500] sm:$0xff]
    %v350 = vld [vmem:[#allocation2 + $0x508] sm:$0xff]
    %v351 = vld [vmem:[#allocation2 + $0x510] sm:$0xff]
    %v352 = vld [vmem:[#allocation2 + $0x518] sm:$0xff]
    %v353 = vld [vmem:[#allocation2 + $0x520] sm:$0xff]
    %v354 = vld [vmem:[#allocation2 + $0x528] sm:$0xff]
    %v355 = vld [vmem:[#allocation2 + $0x530] sm:$0xff]
    %v356 = vld [vmem:[#allocation2 + $0x538] sm:$0xff]
    %v357 = vld [vmem:[#allocation2 + $0x540] sm:$0xff]
    %v358 = vld [vmem:[#allocation2 + $0x548] sm:$0xff]
    %v359 = vld [vmem:[#allocation2 + $0x550] sm:$0xff]
    %v360 = vld [vmem:[#allocation2 + $0x558] sm:$0xff]
    %v361 = vld [vmem:[#allocation2 + $0x560] sm:$0xff]
    %v362 = vld [vmem:[#allocation2 + $0x568] sm:$0xff]
    %v363 = vld [vmem:[#allocation2 + $0x570] sm:$0xff]
    %v364 = vld [vmem:[#allocation2 + $0x578] sm:$0xff]
    %v365 = vld [vmem:[#allocation2 + $0x580] sm:$0xff]
    %v366 = vld [vmem:[#allocation2 + $0x588] sm:$0xff]
    %v367 = vld [vmem:[#allocation2 + $0x590] sm:$0xff]
    %v368 = vld [vmem:[#allocation2 + $0x598] sm:$0xff]
    %v369 = vld [vmem:[#allocation2 + $0x5a0] sm:$0xff]
    %v370 = vld [vmem:[#allocation2 + $0x5a8] sm:$0xff]
    %v371 = vld [vmem:[#allocation2 + $0x5b0] sm:$0xff]
    %v372 = vld [vmem:[#allocation2 + $0x5b8] sm:$0xff]
    %v373 = vld [vmem:[#allocation2 + $0x5c0] sm:$0xff]
    %v374 = vld [vmem:[#allocation2 + $0x5c8] sm:$0xff]
    %v375 = vld [vmem:[#allocation2 + $0x5d0] sm:$0xff]
    %v376 = vld [vmem:[#allocation2 + $0x5d8] sm:$0xff]
    %v377 = vld [vmem:[#allocation2 + $0x5e0] sm:$0xff]
    %v378 = vld [vmem:[#allocation2 + $0x5e8] sm:$0xff]
    %v379 = vld [vmem:[#allocation2 + $0x5f0] sm:$0xff]
    %v380 = vld [vmem:[#allocation2 + $0x5f8] sm:$0xff]
    %v381 = vld [vmem:[#allocation2 + $0x600] sm:$0xff]
    %v382 = vld [vmem:[#allocation2 + $0x608] sm:$0xff]
    %v383 = vld [vmem:[#allocation2 + $0x610] sm:$0xff]
    %v384 = vld [vmem:[#allocation2 + $0x618] sm:$0xff]
    %v581 = vunpack.c.l.b16 %v189
    %v582 = vunpack.c.h.b16 %v189
    %v583 = vunpack.c.l.b16 %v190
    %v584 = vunpack.c.h.b16 %v190
    %v585 = vunpack.c.l.b16 %v191
    %v586 = vunpack.c.h.b16 %v191
    %v587 = vunpack.c.l.b16 %v192
    %v588 = vunpack.c.h.b16 %v192
    %v589 = vunpack.c.l.b16 %v193
    %v590 = vunpack.c.h.b16 %v193
    %v591 = vunpack.c.l.b16 %v194
    %v592 = vunpack.c.h.b16 %v194
    %v593 = vunpack.c.l.b16 %v195
    %v594 = vunpack.c.h.b16 %v195
    %v595 = vunpack.c.l.b16 %v196
    %v596 = vunpack.c.h.b16 %v196
    %v597 = vunpack.c.l.b16 %v197
    %v598 = vunpack.c.h.b16 %v197
    %v599 = vunpack.c.l.b16 %v198
    %v600 = vunpack.c.h.b16 %v198
    %v601 = vunpack.c.l.b16 %v199
    %v602 = vunpack.c.h.b16 %v199
    %v603 = vunpack.c.l.b16 %v200
    %v604 = vunpack.c.h.b16 %v200
    %v605 = vunpack.c.l.b16 %v201
    %v606 = vunpack.c.h.b16 %v201
    %v607 = vunpack.c.l.b16 %v202
    %v608 = vunpack.c.h.b16 %v202
    %v609 = vunpack.c.l.b16 %v203
    %v610 = vunpack.c.h.b16 %v203
    %v611 = vunpack.c.l.b16 %v204
    %v612 = vunpack.c.h.b16 %v204
    %v613 = vunpack.c.l.b16 %v205
    %v614 = vunpack.c.h.b16 %v205
    %v615 = vunpack.c.l.b16 %v206
    %v616 = vunpack.c.h.b16 %v206
    %v617 = vunpack.c.l.b16 %v207
    %v618 = vunpack.c.h.b16 %v207
    %v619 = vunpack.c.l.b16 %v208
    %v620 = vunpack.c.h.b16 %v208
    %v621 = vunpack.c.l.b16 %v209
    %v622 = vunpack.c.h.b16 %v209
    %v623 = vunpack.c.l.b16 %v210
    %v624 = vunpack.c.h.b16 %v210
    %v625 = vunpack.c.l.b16 %v211
    %v626 = vunpack.c.h.b16 %v211
    %v627 = vunpack.c.l.b16 %v212
    %v628 = vunpack.c.h.b16 %v212
    %v629 = vunpack.c.l.b16 %v213
    %v630 = vunpack.c.h.b16 %v213
    %v631 = vunpack.c.l.b16 %v214
    %v632 = vunpack.c.h.b16 %v214
    %v633 = vunpack.c.l.b16 %v215
    %v634 = vunpack.c.h.b16 %v215
    %v635 = vunpack.c.l.b16 %v216
    %v636 = vunpack.c.h.b16 %v216
    %v637 = vunpack.c.l.b16 %v217
    %v638 = vunpack.c.h.b16 %v217
    %v639 = vunpack.c.l.b16 %v218
    %v640 = vunpack.c.h.b16 %v218
    %v641 = vunpack.c.l.b16 %v219
    %v642 = vunpack.c.h.b16 %v219
    %v643 = vunpack.c.l.b16 %v220
    %v644 = vunpack.c.h.b16 %v220
    %v645 = vunpack.c.l.b16 %v221
    %v646 = vunpack.c.h.b16 %v221
    %v647 = vunpack.c.l.b16 %v222
    %v648 = vunpack.c.h.b16 %v222
    %v649 = vunpack.c.l.b16 %v223
    %v650 = vunpack.c.h.b16 %v223
    %v651 = vunpack.c.l.b16 %v224
    %v652 = vunpack.c.h.b16 %v224
    %v653 = vunpack.c.l.b16 %v225
    %v654 = vunpack.c.h.b16 %v225
    %v655 = vunpack.c.l.b16 %v226
    %v656 = vunpack.c.h.b16 %v226
    %v657 = vunpack.c.l.b16 %v227
    %v658 = vunpack.c.h.b16 %v227
    %v659 = vunpack.c.l.b16 %v228
    %v660 = vunpack.c.h.b16 %v228
    %v661 = vunpack.c.l.b16 %v229
    %v662 = vunpack.c.h.b16 %v229
    %v663 = vunpack.c.l.b16 %v230
    %v664 = vunpack.c.h.b16 %v230
    %v665 = vunpack.c.l.b16 %v231
    %v666 = vunpack.c.h.b16 %v231
    %v667 = vunpack.c.l.b16 %v232
    %v668 = vunpack.c.h.b16 %v232
    %v669 = vunpack.c.l.b16 %v233
    %v670 = vunpack.c.h.b16 %v233
    %v671 = vunpack.c.l.b16 %v234
    %v672 = vunpack.c.h.b16 %v234
    %v673 = vunpack.c.l.b16 %v235
    %v674 = vunpack.c.h.b16 %v235
    %v675 = vunpack.c.l.b16 %v236
    %v676 = vunpack.c.h.b16 %v236
    %v677 = vunpack.c.l.b16 %v237
    %v678 = vunpack.c.h.b16 %v237
    %v679 = vunpack.c.l.b16 %v238
    %v680 = vunpack.c.h.b16 %v238
    %v681 = vunpack.c.l.b16 %v239
    %v682 = vunpack.c.h.b16 %v239
    %v683 = vunpack.c.l.b16 %v240
    %v684 = vunpack.c.h.b16 %v240
    %v685 = vunpack.c.l.b16 %v241
    %v686 = vunpack.c.h.b16 %v241
    %v687 = vunpack.c.l.b16 %v242
    %v688 = vunpack.c.h.b16 %v242
    %v689 = vunpack.c.l.b16 %v243
    %v690 = vunpack.c.h.b16 %v243
    %v691 = vunpack.c.l.b16 %v244
    %v692 = vunpack.c.h.b16 %v244
    %v693 = vunpack.c.l.b16 %v245
    %v694 = vunpack.c.h.b16 %v245
    %v695 = vunpack.c.l.b16 %v246
    %v696 = vunpack.c.h.b16 %v246
    %v697 = vunpack.c.l.b16 %v247
    %v698 = vunpack.c.h.b16 %v247
    %v699 = vunpack.c.l.b16 %v248
    %v700 = vunpack.c.h.b16 %v248
    %v701 = vunpack.c.l.b16 %v249
    %v702 = vunpack.c.h.b16 %v249
    %v703 = vunpack.c.l.b16 %v250
    %v704 = vunpack.c.h.b16 %v250
    %v705 = vunpack.c.l.b16 %v251
    %v706 = vunpack.c.h.b16 %v251
    %v707 = vunpack.c.l.b16 %v252
    %v708 = vunpack.c.h.b16 %v252
    %v709 = vunpack.c.l.b16 %v253
    %v710 = vunpack.c.h.b16 %v253
    %v711 = vunpack.c.l.b16 %v254
    %v712 = vunpack.c.h.b16 %v254
    %v713 = vunpack.c.l.b16 %v255
    %v714 = vunpack.c.h.b16 %v255
    %v715 = vunpack.c.l.b16 %v256
    %v716 = vunpack.c.h.b16 %v256
    %v717 = vunpack.c.l.b16 %v257
    %v718 = vunpack.c.h.b16 %v257
    %v719 = vunpack.c.l.b16 %v258
    %v720 = vunpack.c.h.b16 %v258
    %v721 = vunpack.c.l.b16 %v259
    %v722 = vunpack.c.h.b16 %v259
    %v723 = vunpack.c.l.b16 %v260
    %v724 = vunpack.c.h.b16 %v260
    %v725 = vunpack.c.l.b16 %v261
    %v726 = vunpack.c.h.b16 %v261
    %v727 = vunpack.c.l.b16 %v262
    %v728 = vunpack.c.h.b16 %v262
    %v729 = vunpack.c.l.b16 %v263
    %v730 = vunpack.c.h.b16 %v263
    %v731 = vunpack.c.l.b16 %v264
    %v732 = vunpack.c.h.b16 %v264
    %v733 = vunpack.c.l.b16 %v265
    %v734 = vunpack.c.h.b16 %v265
    %v735 = vunpack.c.l.b16 %v266
    %v736 = vunpack.c.h.b16 %v266
    %v737 = vunpack.c.l.b16 %v267
    %v738 = vunpack.c.h.b16 %v267
    %v739 = vunpack.c.l.b16 %v268
    %v740 = vunpack.c.h.b16 %v268
    %v741 = vunpack.c.l.b16 %v269
    %v742 = vunpack.c.h.b16 %v269
    %v743 = vunpack.c.l.b16 %v270
    %v744 = vunpack.c.h.b16 %v270
    %v745 = vunpack.c.l.b16 %v271
    %v746 = vunpack.c.h.b16 %v271
    %v747 = vunpack.c.l.b16 %v272
    %v748 = vunpack.c.h.b16 %v272
    %v749 = vunpack.c.l.b16 %v273
    %v750 = vunpack.c.h.b16 %v273
    %v751 = vunpack.c.l.b16 %v274
    %v752 = vunpack.c.h.b16 %v274
    %v753 = vunpack.c.l.b16 %v275
    %v754 = vunpack.c.h.b16 %v275
    %v755 = vunpack.c.l.b16 %v276
    %v756 = vunpack.c.h.b16 %v276
    %v757 = vunpack.c.l.b16 %v277
    %v758 = vunpack.c.h.b16 %v277
    %v759 = vunpack.c.l.b16 %v278
    %v760 = vunpack.c.h.b16 %v278
    %v761 = vunpack.c.l.b16 %v279
    %v762 = vunpack.c.h.b16 %v279
    %v763 = vunpack.c.l.b16 %v280
    %v764 = vunpack.c.h.b16 %v280
    %v765 = vunpack.c.l.b16 %v281
    %v766 = vunpack.c.h.b16 %v281
    %v767 = vunpack.c.l.b16 %v282
    %v768 = vunpack.c.h.b16 %v282
    %v769 = vunpack.c.l.b16 %v283
    %v770 = vunpack.c.h.b16 %v283
    %v771 = vunpack.c.l.b16 %v284
    %v772 = vunpack.c.h.b16 %v284
    %v773 = vunpack.c.l.b16 %v285
    %v774 = vunpack.c.h.b16 %v285
    %v775 = vunpack.c.l.b16 %v286
    %v776 = vunpack.c.h.b16 %v286
    %v777 = vunpack.c.l.b16 %v287
    %v778 = vunpack.c.h.b16 %v287
    %v779 = vunpack.c.l.b16 %v288
    %v780 = vunpack.c.h.b16 %v288
    %v781 = vunpack.c.l.b16 %v289
    %v782 = vunpack.c.h.b16 %v289
    %v783 = vunpack.c.l.b16 %v290
    %v784 = vunpack.c.h.b16 %v290
    %v785 = vunpack.c.l.b16 %v291
    %v786 = vunpack.c.h.b16 %v291
    %v787 = vunpack.c.l.b16 %v292
    %v788 = vunpack.c.h.b16 %v292
    %v789 = vunpack.c.l.b16 %v293
    %v790 = vunpack.c.h.b16 %v293
    %v791 = vunpack.c.l.b16 %v294
    %v792 = vunpack.c.h.b16 %v294
    %v793 = vunpack.c.l.b16 %v295
    %v794 = vunpack.c.h.b16 %v295
    %v795 = vunpack.c.l.b16 %v296
    %v796 = vunpack.c.h.b16 %v296
    %v797 = vunpack.c.l.b16 %v297
    %v798 = vunpack.c.h.b16 %v297
    %v799 = vunpack.c.l.b16 %v298
    %v800 = vunpack.c.h.b16 %v298
    %v801 = vunpack.c.l.b16 %v299
    %v802 = vunpack.c.h.b16 %v299
    %v803 = vunpack.c.l.b16 %v300
    %v804 = vunpack.c.h.b16 %v300
    %v805 = vunpack.c.l.b16 %v301
    %v806 = vunpack.c.h.b16 %v301
    %v807 = vunpack.c.l.b16 %v302
    %v808 = vunpack.c.h.b16 %v302
    %v809 = vunpack.c.l.b16 %v303
    %v810 = vunpack.c.h.b16 %v303
    %v811 = vunpack.c.l.b16 %v304
    %v812 = vunpack.c.h.b16 %v304
    %v813 = vunpack.c.l.b16 %v305
    %v814 = vunpack.c.h.b16 %v305
    %v815 = vunpack.c.l.b16 %v306
    %v816 = vunpack.c.h.b16 %v306
    %v817 = vunpack.c.l.b16 %v307
    %v818 = vunpack.c.h.b16 %v307
    %v819 = vunpack.c.l.b16 %v308
    %v820 = vunpack.c.h.b16 %v308
    %v821 = vunpack.c.l.b16 %v309
    %v822 = vunpack.c.h.b16 %v309
    %v823 = vunpack.c.l.b16 %v310
    %v824 = vunpack.c.h.b16 %v310
    %v825 = vunpack.c.l.b16 %v311
    %v826 = vunpack.c.h.b16 %v311
    %v827 = vunpack.c.l.b16 %v312
    %v828 = vunpack.c.h.b16 %v312
    %v829 = vunpack.c.l.b16 %v313
    %v830 = vunpack.c.h.b16 %v313
    %v831 = vunpack.c.l.b16 %v314
    %v832 = vunpack.c.h.b16 %v314
    %v833 = vunpack.c.l.b16 %v315
    %v834 = vunpack.c.h.b16 %v315
    %v835 = vunpack.c.l.b16 %v316
    %v836 = vunpack.c.h.b16 %v316
    %v837 = vunpack.c.l.b16 %v317
    %v838 = vunpack.c.h.b16 %v317
    %v839 = vunpack.c.l.b16 %v318
    %v840 = vunpack.c.h.b16 %v318
    %v841 = vunpack.c.l.b16 %v319
    %v842 = vunpack.c.h.b16 %v319
    %v843 = vunpack.c.l.b16 %v320
    %v844 = vunpack.c.h.b16 %v320
    %v845 = vunpack.c.l.b16 %v321
    %v846 = vunpack.c.h.b16 %v321
    %v847 = vunpack.c.l.b16 %v322
    %v848 = vunpack.c.h.b16 %v322
    %v849 = vunpack.c.l.b16 %v323
    %v850 = vunpack.c.h.b16 %v323
    %v851 = vunpack.c.l.b16 %v324
    %v852 = vunpack.c.h.b16 %v324
    %v853 = vunpack.c.l.b16 %v325
    %v854 = vunpack.c.h.b16 %v325
    %v855 = vunpack.c.l.b16 %v326
    %v856 = vunpack.c.h.b16 %v326
    %v857 = vunpack.c.l.b16 %v327
    %v858 = vunpack.c.h.b16 %v327
    %v859 = vunpack.c.l.b16 %v328
    %v860 = vunpack.c.h.b16 %v328
    %v861 = vunpack.c.l.b16 %v329
    %v862 = vunpack.c.h.b16 %v329
    %v863 = vunpack.c.l.b16 %v330
    %v864 = vunpack.c.h.b16 %v330
    %v865 = vunpack.c.l.b16 %v331
    %v866 = vunpack.c.h.b16 %v331
    %v867 = vunpack.c.l.b16 %v332
    %v868 = vunpack.c.h.b16 %v332
    %v869 = vunpack.c.l.b16 %v333
    %v870 = vunpack.c.h.b16 %v333
    %v871 = vunpack.c.l.b16 %v334
    %v872 = vunpack.c.h.b16 %v334
    %v873 = vunpack.c.l.b16 %v335
    %v874 = vunpack.c.h.b16 %v335
    %v875 = vunpack.c.l.b16 %v336
    %v876 = vunpack.c.h.b16 %v336
    %v877 = vunpack.c.l.b16 %v337
    %v878 = vunpack.c.h.b16 %v337
    %v879 = vunpack.c.l.b16 %v338
    %v880 = vunpack.c.h.b16 %v338
    %v881 = vunpack.c.l.b16 %v339
    %v882 = vunpack.c.h.b16 %v339
    %v883 = vunpack.c.l.b16 %v340
    %v884 = vunpack.c.h.b16 %v340
    %v885 = vunpack.c.l.b16 %v341
    %v886 = vunpack.c.h.b16 %v341
    %v887 = vunpack.c.l.b16 %v342
    %v888 = vunpack.c.h.b16 %v342
    %v889 = vunpack.c.l.b16 %v343
    %v890 = vunpack.c.h.b16 %v343
    %v891 = vunpack.c.l.b16 %v344
    %v892 = vunpack.c.h.b16 %v344
    %v893 = vunpack.c.l.b16 %v345
    %v894 = vunpack.c.h.b16 %v345
    %v895 = vunpack.c.l.b16 %v346
    %v896 = vunpack.c.h.b16 %v346
    %v897 = vunpack.c.l.b16 %v347
    %v898 = vunpack.c.h.b16 %v347
    %v899 = vunpack.c.l.b16 %v348
    %v900 = vunpack.c.h.b16 %v348
    %v901 = vunpack.c.l.b16 %v349
    %v902 = vunpack.c.h.b16 %v349
    %v903 = vunpack.c.l.b16 %v350
    %v904 = vunpack.c.h.b16 %v350
    %v905 = vunpack.c.l.b16 %v351
    %v906 = vunpack.c.h.b16 %v351
    %v907 = vunpack.c.l.b16 %v352
    %v908 = vunpack.c.h.b16 %v352
    %v909 = vunpack.c.l.b16 %v353
    %v910 = vunpack.c.h.b16 %v353
    %v911 = vunpack.c.l.b16 %v354
    %v912 = vunpack.c.h.b16 %v354
    %v913 = vunpack.c.l.b16 %v355
    %v914 = vunpack.c.h.b16 %v355
    %v915 = vunpack.c.l.b16 %v356
    %v916 = vunpack.c.h.b16 %v356
    %v917 = vunpack.c.l.b16 %v357
    %v918 = vunpack.c.h.b16 %v357
    %v919 = vunpack.c.l.b16 %v358
    %v920 = vunpack.c.h.b16 %v358
    %v921 = vunpack.c.l.b16 %v359
    %v922 = vunpack.c.h.b16 %v359
    %v923 = vunpack.c.l.b16 %v360
    %v924 = vunpack.c.h.b16 %v360
    %v925 = vunpack.c.l.b16 %v361
    %v926 = vunpack.c.h.b16 %v361
    %v927 = vunpack.c.l.b16 %v362
    %v928 = vunpack.c.h.b16 %v362
    %v929 = vunpack.c.l.b16 %v363
    %v930 = vunpack.c.h.b16 %v363
    %v931 = vunpack.c.l.b16 %v364
    %v932 = vunpack.c.h.b16 %v364
    %v933 = vunpack.c.l.b16 %v365
    %v934 = vunpack.c.h.b16 %v365
    %v935 = vunpack.c.l.b16 %v366
    %v936 = vunpack.c.h.b16 %v366
    %v937 = vunpack.c.l.b16 %v367
    %v938 = vunpack.c.h.b16 %v367
    %v939 = vunpack.c.l.b16 %v368
    %v940 = vunpack.c.h.b16 %v368
    %v941 = vunpack.c.l.b16 %v369
    %v942 = vunpack.c.h.b16 %v369
    %v943 = vunpack.c.l.b16 %v370
    %v944 = vunpack.c.h.b16 %v370
    %v945 = vunpack.c.l.b16 %v371
    %v946 = vunpack.c.h.b16 %v371
    %v947 = vunpack.c.l.b16 %v372
    %v948 = vunpack.c.h.b16 %v372
    %v949 = vunpack.c.l.b16 %v373
    %v950 = vunpack.c.h.b16 %v373
    %v951 = vunpack.c.l.b16 %v374
    %v952 = vunpack.c.h.b16 %v374
    %v953 = vunpack.c.l.b16 %v375
    %v954 = vunpack.c.h.b16 %v375
    %v955 = vunpack.c.l.b16 %v376
    %v956 = vunpack.c.h.b16 %v376
    %v957 = vunpack.c.l.b16 %v377
    %v958 = vunpack.c.h.b16 %v377
    %v959 = vunpack.c.l.b16 %v378
    %v960 = vunpack.c.h.b16 %v378
    %v961 = vunpack.c.l.b16 %v379
    %v962 = vunpack.c.h.b16 %v379
    %v963 = vunpack.c.l.b16 %v380
    %v964 = vunpack.c.h.b16 %v380
    %v965 = vunpack.c.l.b16 %v381
    %v966 = vunpack.c.h.b16 %v381
    %v967 = vunpack.c.l.b16 %v382
    %v968 = vunpack.c.h.b16 %v382
    %v969 = vunpack.c.l.b16 %v383
    %v970 = vunpack.c.h.b16 %v383
    %v971 = vunpack.c.l.b16 %v384
    %v972 = vunpack.c.h.b16 %v384
    %v973 = vpack.c.b16 %v585, %v581
    %v974 = vpack.c.b16 %v586, %v582
    %v975 = vpack.c.b16 %v587, %v583
    %v976 = vpack.c.b16 %v588, %v584
    %v977 = vpack.c.b16 %v593, %v589
    %v978 = vpack.c.b16 %v594, %v590
    %v979 = vpack.c.b16 %v595, %v591
    %v980 = vpack.c.b16 %v596, %v592
    %v981 = vpack.c.b16 %v601, %v597
    %v982 = vpack.c.b16 %v602, %v598
    %v983 = vpack.c.b16 %v603, %v599
    %v984 = vpack.c.b16 %v604, %v600
    %v985 = vpack.c.b16 %v609, %v605
    %v986 = vpack.c.b16 %v610, %v606
    %v987 = vpack.c.b16 %v611, %v607
    %v988 = vpack.c.b16 %v612, %v608
    %v989 = vpack.c.b16 %v617, %v613
    %v990 = vpack.c.b16 %v618, %v614
    %v991 = vpack.c.b16 %v619, %v615
    %v992 = vpack.c.b16 %v620, %v616
    %v993 = vpack.c.b16 %v625, %v621
    %v994 = vpack.c.b16 %v626, %v622
    %v995 = vpack.c.b16 %v627, %v623
    %v996 = vpack.c.b16 %v628, %v624
    %v997 = vpack.c.b16 %v633, %v629
    %v998 = vpack.c.b16 %v634, %v630
    %v999 = vpack.c.b16 %v635, %v631
    %v1000 = vpack.c.b16 %v636, %v632
    %v1001 = vpack.c.b16 %v641, %v637
    %v1002 = vpack.c.b16 %v642, %v638
    %v1003 = vpack.c.b16 %v643, %v639
    %v1004 = vpack.c.b16 %v644, %v640
    %v1005 = vpack.c.b16 %v649, %v645
    %v1006 = vpack.c.b16 %v650, %v646
    %v1007 = vpack.c.b16 %v651, %v647
    %v1008 = vpack.c.b16 %v652, %v648
    %v1009 = vpack.c.b16 %v657, %v653
    %v1010 = vpack.c.b16 %v658, %v654
    %v1011 = vpack.c.b16 %v659, %v655
    %v1012 = vpack.c.b16 %v660, %v656
    %v1013 = vpack.c.b16 %v665, %v661
    %v1014 = vpack.c.b16 %v666, %v662
    %v1015 = vpack.c.b16 %v667, %v663
    %v1016 = vpack.c.b16 %v668, %v664
    %v1017 = vpack.c.b16 %v673, %v669
    %v1018 = vpack.c.b16 %v674, %v670
    %v1019 = vpack.c.b16 %v675, %v671
    %v1020 = vpack.c.b16 %v676, %v672
    %v1021 = vpack.c.b16 %v681, %v677
    %v1022 = vpack.c.b16 %v682, %v678
    %v1023 = vpack.c.b16 %v683, %v679
    %v1024 = vpack.c.b16 %v684, %v680
    %v1025 = vpack.c.b16 %v689, %v685
    %v1026 = vpack.c.b16 %v690, %v686
    %v1027 = vpack.c.b16 %v691, %v687
    %v1028 = vpack.c.b16 %v692, %v688
    %v1029 = vpack.c.b16 %v697, %v693
    %v1030 = vpack.c.b16 %v698, %v694
    %v1031 = vpack.c.b16 %v699, %v695
    %v1032 = vpack.c.b16 %v700, %v696
    %v1033 = vpack.c.b16 %v705, %v701
    %v1034 = vpack.c.b16 %v706, %v702
    %v1035 = vpack.c.b16 %v707, %v703
    %v1036 = vpack.c.b16 %v708, %v704
    %v1037 = vpack.c.b16 %v713, %v709
    %v1038 = vpack.c.b16 %v714, %v710
    %v1039 = vpack.c.b16 %v715, %v711
    %v1040 = vpack.c.b16 %v716, %v712
    %v1041 = vpack.c.b16 %v721, %v717
    %v1042 = vpack.c.b16 %v722, %v718
    %v1043 = vpack.c.b16 %v723, %v719
    %v1044 = vpack.c.b16 %v724, %v720
    %v1045 = vpack.c.b16 %v729, %v725
    %v1046 = vpack.c.b16 %v730, %v726
    %v1047 = vpack.c.b16 %v731, %v727
    %v1048 = vpack.c.b16 %v732, %v728
    %v1049 = vpack.c.b16 %v737, %v733
    %v1050 = vpack.c.b16 %v738, %v734
    %v1051 = vpack.c.b16 %v739, %v735
    %v1052 = vpack.c.b16 %v740, %v736
    %v1053 = vpack.c.b16 %v745, %v741
    %v1054 = vpack.c.b16 %v746, %v742
    %v1055 = vpack.c.b16 %v747, %v743
    %v1056 = vpack.c.b16 %v748, %v744
    %v1057 = vpack.c.b16 %v753, %v749
    %v1058 = vpack.c.b16 %v754, %v750
    %v1059 = vpack.c.b16 %v755, %v751
    %v1060 = vpack.c.b16 %v756, %v752
    %v1061 = vpack.c.b16 %v761, %v757
    %v1062 = vpack.c.b16 %v762, %v758
    %v1063 = vpack.c.b16 %v763, %v759
    %v1064 = vpack.c.b16 %v764, %v760
    %v1065 = vpack.c.b16 %v769, %v765
    %v1066 = vpack.c.b16 %v770, %v766
    %v1067 = vpack.c.b16 %v771, %v767
    %v1068 = vpack.c.b16 %v772, %v768
    %v1069 = vpack.c.b16 %v777, %v773
    %v1070 = vpack.c.b16 %v778, %v774
    %v1071 = vpack.c.b16 %v779, %v775
    %v1072 = vpack.c.b16 %v780, %v776
    %v1073 = vpack.c.b16 %v785, %v781
    %v1074 = vpack.c.b16 %v786, %v782
    %v1075 = vpack.c.b16 %v787, %v783
    %v1076 = vpack.c.b16 %v788, %v784
    %v1077 = vpack.c.b16 %v793, %v789
    %v1078 = vpack.c.b16 %v794, %v790
    %v1079 = vpack.c.b16 %v795, %v791
    %v1080 = vpack.c.b16 %v796, %v792
    %v1081 = vpack.c.b16 %v801, %v797
    %v1082 = vpack.c.b16 %v802, %v798
    %v1083 = vpack.c.b16 %v803, %v799
    %v1084 = vpack.c.b16 %v804, %v800
    %v1085 = vpack.c.b16 %v809, %v805
    %v1086 = vpack.c.b16 %v810, %v806
    %v1087 = vpack.c.b16 %v811, %v807
    %v1088 = vpack.c.b16 %v812, %v808
    %v1089 = vpack.c.b16 %v817, %v813
    %v1090 = vpack.c.b16 %v818, %v814
    %v1091 = vpack.c.b16 %v819, %v815
    %v1092 = vpack.c.b16 %v820, %v816
    %v1093 = vpack.c.b16 %v825, %v821
    %v1094 = vpack.c.b16 %v826, %v822
    %v1095 = vpack.c.b16 %v827, %v823
    %v1096 = vpack.c.b16 %v828, %v824
    %v1097 = vpack.c.b16 %v833, %v829
    %v1098 = vpack.c.b16 %v834, %v830
    %v1099 = vpack.c.b16 %v835, %v831
    %v1100 = vpack.c.b16 %v836, %v832
    %v1101 = vpack.c.b16 %v841, %v837
    %v1102 = vpack.c.b16 %v842, %v838
    %v1103 = vpack.c.b16 %v843, %v839
    %v1104 = vpack.c.b16 %v844, %v840
    %v1105 = vpack.c.b16 %v849, %v845
    %v1106 = vpack.c.b16 %v850, %v846
    %v1107 = vpack.c.b16 %v851, %v847
    %v1108 = vpack.c.b16 %v852, %v848
    %v1109 = vpack.c.b16 %v857, %v853
    %v1110 = vpack.c.b16 %v858, %v854
    %v1111 = vpack.c.b16 %v859, %v855
    %v1112 = vpack.c.b16 %v860, %v856
    %v1113 = vpack.c.b16 %v865, %v861
    %v1114 = vpack.c.b16 %v866, %v862
    %v1115 = vpack.c.b16 %v867, %v863
    %v1116 = vpack.c.b16 %v868, %v864
    %v1117 = vpack.c.b16 %v873, %v869
    %v1118 = vpack.c.b16 %v874, %v870
    %v1119 = vpack.c.b16 %v875, %v871
    %v1120 = vpack.c.b16 %v876, %v872
    %v1121 = vpack.c.b16 %v881, %v877
    %v1122 = vpack.c.b16 %v882, %v878
    %v1123 = vpack.c.b16 %v883, %v879
    %v1124 = vpack.c.b16 %v884, %v880
    %v1125 = vpack.c.b16 %v889, %v885
    %v1126 = vpack.c.b16 %v890, %v886
    %v1127 = vpack.c.b16 %v891, %v887
    %v1128 = vpack.c.b16 %v892, %v888
    %v1129 = vpack.c.b16 %v897, %v893
    %v1130 = vpack.c.b16 %v898, %v894
    %v1131 = vpack.c.b16 %v899, %v895
    %v1132 = vpack.c.b16 %v900, %v896
    %v1133 = vpack.c.b16 %v905, %v901
    %v1134 = vpack.c.b16 %v906, %v902
    %v1135 = vpack.c.b16 %v907, %v903
    %v1136 = vpack.c.b16 %v908, %v904
    %v1137 = vpack.c.b16 %v913, %v909
    %v1138 = vpack.c.b16 %v914, %v910
    %v1139 = vpack.c.b16 %v915, %v911
    %v1140 = vpack.c.b16 %v916, %v912
    %v1141 = vpack.c.b16 %v921, %v917
    %v1142 = vpack.c.b16 %v922, %v918
    %v1143 = vpack.c.b16 %v923, %v919
    %v1144 = vpack.c.b16 %v924, %v920
    %v1145 = vpack.c.b16 %v929, %v925
    %v1146 = vpack.c.b16 %v930, %v926
    %v1147 = vpack.c.b16 %v931, %v927
    %v1148 = vpack.c.b16 %v932, %v928
    %v1149 = vpack.c.b16 %v937, %v933
    %v1150 = vpack.c.b16 %v938, %v934
    %v1151 = vpack.c.b16 %v939, %v935
    %v1152 = vpack.c.b16 %v940, %v936
    %v1153 = vpack.c.b16 %v945, %v941
    %v1154 = vpack.c.b16 %v946, %v942
    %v1155 = vpack.c.b16 %v947, %v943
    %v1156 = vpack.c.b16 %v948, %v944
    %v1157 = vpack.c.b16 %v953, %v949
    %v1158 = vpack.c.b16 %v954, %v950
    %v1159 = vpack.c.b16 %v955, %v951
    %v1160 = vpack.c.b16 %v956, %v952
    %v1161 = vpack.c.b16 %v961, %v957
    %v1162 = vpack.c.b16 %v962, %v958
    %v1163 = vpack.c.b16 %v963, %v959
    %v1164 = vpack.c.b16 %v964, %v960
    %v1165 = vpack.c.b16 %v969, %v965
    %v1166 = vpack.c.b16 %v970, %v966
    %v1167 = vpack.c.b16 %v971, %v967
    %v1168 = vpack.c.b16 %v972, %v968
    %vm1365 = vcmask 130048
    %v1367 = vsel %vm1365, %v188, 0
    %1369 = vmatprep.subr.bf16.mxu0 %v1002
    %1370 = vmatpush1.bf16.msra.mxu0 %v1001
    %1371 = vmatprep.subr.bf16.mxu0 %v998
    %1372 = vmatpush1.bf16.msra.mxu0 %v997
    %1373 = vmatprep.subr.bf16.mxu0 %v994
    %1374 = vmatpush1.bf16.msra.mxu0 %v993
    %1375 = vmatprep.subr.bf16.mxu0 %v990
    %1376 = vmatpush1.bf16.msra.mxu0 %v989
    %1377 = vmatprep.subr.bf16.mxu0 %v986
    %1378 = vmatpush1.bf16.msra.mxu0 %v985
    %1379 = vmatprep.subr.bf16.mxu0 %v982
    %1380 = vmatpush1.bf16.msra.mxu0 %v981
    %1381 = vmatprep.subr.bf16.mxu0 %v978
    %1382 = vmatpush1.bf16.msra.mxu0 %v977
    %1383 = vmatprep.subr.bf16.mxu0 %v974
    %1384 = vmatpush1.bf16.msra.mxu0 %v973
    %1385 = vmatprep.subr.bf16.mxu0 %v1034
    %1386 = vmatpush2.bf16.msra.mxu0 %v1033
    %1387 = vmatprep.subr.bf16.mxu0 %v1030
    %1388 = vmatpush2.bf16.msra.mxu0 %v1029
    %1389 = vmatprep.subr.bf16.mxu0 %v1026
    %1390 = vmatpush2.bf16.msra.mxu0 %v1025
    %1391 = vmatprep.subr.bf16.mxu0 %v1022
    %1392 = vmatpush2.bf16.msra.mxu0 %v1021
    %1393 = vmatprep.subr.bf16.mxu0 %v1018
    %1394 = vmatpush2.bf16.msra.mxu0 %v1017
    %1395 = vmatprep.subr.bf16.mxu0 %v1014
    %1396 = vmatpush2.bf16.msra.mxu0 %v1013
    %1397 = vmatprep.subr.bf16.mxu0 %v1010
    %1398 = vmatpush2.bf16.msra.mxu0 %v1009
    %1399 = vmatprep.subr.bf16.mxu0 %v1006
    %1400 = vmatpush2.bf16.msra.mxu0 %v1005
    %1401 = vmatprep.mubr.bf16.mxu0 %v183
    %1402 = vmatmul.mubr.bf16.gmra.mxu0 %v182
    %v1403 = vpop.f32.mrf.mxu0
    %v1404 = vadd.f32 0.0, %v1403
    %v1405 = vpop.f32.mrf.mxu0
    %v1406 = vadd.f32 0.0, %v1405
    %v1407 = vpop.f32.mrf.mxu0
    %v1408 = vpop.f32.mrf.mxu0
    %1409 = vdwg.mxu0
    %1410 = vmatprep.subr.bf16.mxu0 %v1066
    %1411 = vmatpush1.bf16.msra.mxu0 %v1065
    %1412 = vmatprep.subr.bf16.mxu0 %v1062
    %1413 = vmatpush1.bf16.msra.mxu0 %v1061
    %1414 = vmatprep.subr.bf16.mxu0 %v1058
    %1415 = vmatpush1.bf16.msra.mxu0 %v1057
    %1416 = vmatprep.subr.bf16.mxu0 %v1054
    %1417 = vmatpush1.bf16.msra.mxu0 %v1053
    %1418 = vmatprep.subr.bf16.mxu0 %v1050
    %1419 = vmatpush1.bf16.msra.mxu0 %v1049
    %1420 = vmatprep.subr.bf16.mxu0 %v1046
    %1421 = vmatpush1.bf16.msra.mxu0 %v1045
    %1422 = vmatprep.subr.bf16.mxu0 %v1042
    %1423 = vmatpush1.bf16.msra.mxu0 %v1041
    %1424 = vmatprep.subr.bf16.mxu0 %v1038
    %1425 = vmatpush1.bf16.msra.mxu0 %v1037
    %1426 = vmatprep.subr.bf16.mxu0 %v1098
    %1427 = vmatpush2.bf16.msra.mxu0 %v1097
    %1428 = vmatprep.subr.bf16.mxu0 %v1094
    %1429 = vmatpush2.bf16.msra.mxu0 %v1093
    %1430 = vmatprep.subr.bf16.mxu0 %v1090
    %1431 = vmatpush2.bf16.msra.mxu0 %v1089
    %1432 = vmatprep.subr.bf16.mxu0 %v1086
    %1433 = vmatpush2.bf16.msra.mxu0 %v1085
    %1434 = vmatprep.subr.bf16.mxu0 %v1082
    %1435 = vmatpush2.bf16.msra.mxu0 %v1081
    %1436 = vmatprep.subr.bf16.mxu0 %v1078
    %1437 = vmatpush2.bf16.msra.mxu0 %v1077
    %1438 = vmatprep.subr.bf16.mxu0 %v1074
    %1439 = vmatpush2.bf16.msra.mxu0 %v1073
    %1440 = vmatprep.subr.bf16.mxu0 %v1070
    %1441 = vmatpush2.bf16.msra.mxu0 %v1069
    %1442 = vmatprep.mubr.bf16.mxu0 %v185
    %1443 = vmatmul.mubr.bf16.gmra.mxu0 %v184
    %v1444 = vpop.f32.mrf.mxu0
    %v1445 = vadd.f32 %v1404, %v1444
    %v1446 = vpop.f32.mrf.mxu0
    %v1447 = vadd.f32 %v1406, %v1446
    %v1448 = vpop.f32.mrf.mxu0
    %v1449 = vpop.f32.mrf.mxu0
    %1450 = vdwg.mxu0
    %1451 = vmatprep.subr.bf16.mxu0 %v1130
    %1452 = vmatpush1.bf16.msra.mxu0 %v1129
    %1453 = vmatprep.subr.bf16.mxu0 %v1126
    %1454 = vmatpush1.bf16.msra.mxu0 %v1125
    %1455 = vmatprep.subr.bf16.mxu0 %v1122
    %1456 = vmatpush1.bf16.msra.mxu0 %v1121
    %1457 = vmatprep.subr.bf16.mxu0 %v1118
    %1458 = vmatpush1.bf16.msra.mxu0 %v1117
    %1459 = vmatprep.subr.bf16.mxu0 %v1114
    %1460 = vmatpush1.bf16.msra.mxu0 %v1113
    %1461 = vmatprep.subr.bf16.mxu0 %v1110
    %1462 = vmatpush1.bf16.msra.mxu0 %v1109
    %1463 = vmatprep.subr.bf16.mxu0 %v1106
    %1464 = vmatpush1.bf16.msra.mxu0 %v1105
    %1465 = vmatprep.subr.bf16.mxu0 %v1102
    %1466 = vmatpush1.bf16.msra.mxu0 %v1101
    %1467 = vmatprep.subr.bf16.mxu0 %v1162
    %1468 = vmatpush2.bf16.msra.mxu0 %v1161
    %1469 = vmatprep.subr.bf16.mxu0 %v1158
    %1470 = vmatpush2.bf16.msra.mxu0 %v1157
    %1471 = vmatprep.subr.bf16.mxu0 %v1154
    %1472 = vmatpush2.bf16.msra.mxu0 %v1153
    %1473 = vmatprep.subr.bf16.mxu0 %v1150
    %1474 = vmatpush2.bf16.msra.mxu0 %v1149
    %1475 = vmatprep.subr.bf16.mxu0 %v1146
    %1476 = vmatpush2.bf16.msra.mxu0 %v1145
    %1477 = vmatprep.subr.bf16.mxu0 %v1142
    %1478 = vmatpush2.bf16.msra.mxu0 %v1141
    %1479 = vmatprep.subr.bf16.mxu0 %v1138
    %1480 = vmatpush2.bf16.msra.mxu0 %v1137
    %1481 = vmatprep.subr.bf16.mxu0 %v1134
    %1482 = vmatpush2.bf16.msra.mxu0 %v1133
    %1483 = vmatprep.mubr.bf16.mxu0 %v187
    %1484 = vmatmul.mubr.bf16.gmra.mxu0 %v186
    %v1485 = vpop.f32.mrf.mxu0
    %v1486 = vadd.f32 %v1445, %v1485
    %v1487 = vpop.f32.mrf.mxu0
    %v1488 = vadd.f32 %v1447, %v1487
    %v1489 = vpop.f32.mrf.mxu0
    %v1490 = vpop.f32.mrf.mxu0
    %1491 = vdwg.mxu0
    %1492 = vmatprep.subr.bf16.mxu0 0
    %1493 = vmatpush1.bf16.msra.mxu0 0
    %1494 = vmatprep.subr.bf16.mxu0 0
    %1495 = vmatpush1.bf16.msra.mxu0 0
    %1496 = vmatprep.subr.bf16.mxu0 0
    %1497 = vmatpush1.bf16.msra.mxu0 0
    %1498 = vmatprep.subr.bf16.mxu0 0
    %1499 = vmatpush1.bf16.msra.mxu0 0
    %1500 = vmatprep.subr.bf16.mxu0 0
    %1501 = vmatpush1.bf16.msra.mxu0 0
    %1502 = vmatprep.subr.bf16.mxu0 0
    %1503 = vmatpush1.bf16.msra.mxu0 0
    %1504 = vmatprep.subr.bf16.mxu0 0
    %1505 = vmatpush1.bf16.msra.mxu0 0
    %1506 = vmatprep.subr.bf16.mxu0 %v1166
    %1507 = vmatpush1.bf16.msra.mxu0 %v1165
    %1508 = vmatprep.subr.bf16.mxu0 0
    %1509 = vmatpush2.bf16.msra.mxu0 0
    %1510 = vmatprep.subr.bf16.mxu0 0
    %1511 = vmatpush2.bf16.msra.mxu0 0
    %1512 = vmatprep.subr.bf16.mxu0 0
    %1513 = vmatpush2.bf16.msra.mxu0 0
    %1514 = vmatprep.subr.bf16.mxu0 0
    %1515 = vmatpush2.bf16.msra.mxu0 0
    %1516 = vmatprep.subr.bf16.mxu0 0
    %1517 = vmatpush2.bf16.msra.mxu0 0
    %1518 = vmatprep.subr.bf16.mxu0 0
    %1519 = vmatpush2.bf16.msra.mxu0 0
    %1520 = vmatprep.subr.bf16.mxu0 0
    %1521 = vmatpush2.bf16.msra.mxu0 0
    %1522 = vmatprep.subr.bf16.mxu0 0
    %1523 = vmatpush2.bf16.msra.mxu0 0
    %1524 = vmatprep.mubr.bf16.mxu0 0
    %1525 = vmatmul.mubr.bf16.gmra.mxu0 %v1367
    %v1526 = vpop.f32.mrf.mxu0
    %v1527 = vadd.f32 %v1486, %v1526
    %v1528 = vpop.f32.mrf.mxu0
    %v1529 = vadd.f32 %v1488, %v1528
    %v1530 = vpop.f32.mrf.mxu0
    %v1531 = vpop.f32.mrf.mxu0
    %1532 = vdwg.mxu0
    %1533 = vmatprep.subr.bf16.mxu0 %v1004
    %1534 = vmatpush1.bf16.msra.mxu0 %v1003
    %1535 = vmatprep.subr.bf16.mxu0 %v1000
    %1536 = vmatpush1.bf16.msra.mxu0 %v999
    %1537 = vmatprep.subr.bf16.mxu0 %v996
    %1538 = vmatpush1.bf16.msra.mxu0 %v995
    %1539 = vmatprep.subr.bf16.mxu0 %v992
    %1540 = vmatpush1.bf16.msra.mxu0 %v991
    %1541 = vmatprep.subr.bf16.mxu0 %v988
    %1542 = vmatpush1.bf16.msra.mxu0 %v987
    %1543 = vmatprep.subr.bf16.mxu0 %v984
    %1544 = vmatpush1.bf16.msra.mxu0 %v983
    %1545 = vmatprep.subr.bf16.mxu0 %v980
    %1546 = vmatpush1.bf16.msra.mxu0 %v979
    %1547 = vmatprep.subr.bf16.mxu0 %v976
    %1548 = vmatpush1.bf16.msra.mxu0 %v975
    %1549 = vmatprep.subr.bf16.mxu0 %v1036
    %1550 = vmatpush2.bf16.msra.mxu0 %v1035
    %1551 = vmatprep.subr.bf16.mxu0 %v1032
    %1552 = vmatpush2.bf16.msra.mxu0 %v1031
    %1553 = vmatprep.subr.bf16.mxu0 %v1028
    %1554 = vmatpush2.bf16.msra.mxu0 %v1027
    %1555 = vmatprep.subr.bf16.mxu0 %v1024
    %1556 = vmatpush2.bf16.msra.mxu0 %v1023
    %1557 = vmatprep.subr.bf16.mxu0 %v1020
    %1558 = vmatpush2.bf16.msra.mxu0 %v1019
    %1559 = vmatprep.subr.bf16.mxu0 %v1016
    %1560 = vmatpush2.bf16.msra.mxu0 %v1015
    %1561 = vmatprep.subr.bf16.mxu0 %v1012
    %1562 = vmatpush2.bf16.msra.mxu0 %v1011
    %1563 = vmatprep.subr.bf16.mxu0 %v1008
    %1564 = vmatpush2.bf16.msra.mxu0 %v1007
    %1565 = vmatprep.mubr.bf16.mxu0 %v183
    %1566 = vmatmul.mubr.bf16.gmra.mxu0 %v182
    %v1567 = vpop.f32.mrf.mxu0
    %v1568 = vadd.f32 0.0, %v1567
    %v1569 = vpop.f32.mrf.mxu0
    %v1570 = vadd.f32 0.0, %v1569
    %v1571 = vpop.f32.mrf.mxu0
    %v1572 = vpop.f32.mrf.mxu0
    %1573 = vdwg.mxu0
    %1574 = vmatprep.subr.bf16.mxu0 %v1068
    %1575 = vmatpush1.bf16.msra.mxu0 %v1067
    %1576 = vmatprep.subr.bf16.mxu0 %v1064
    %1577 = vmatpush1.bf16.msra.mxu0 %v1063
    %1578 = vmatprep.subr.bf16.mxu0 %v1060
    %1579 = vmatpush1.bf16.msra.mxu0 %v1059
    %1580 = vmatprep.subr.bf16.mxu0 %v1056
    %1581 = vmatpush1.bf16.msra.mxu0 %v1055
    %1582 = vmatprep.subr.bf16.mxu0 %v1052
    %1583 = vmatpush1.bf16.msra.mxu0 %v1051
    %1584 = vmatprep.subr.bf16.mxu0 %v1048
    %1585 = vmatpush1.bf16.msra.mxu0 %v1047
    %1586 = vmatprep.subr.bf16.mxu0 %v1044
    %1587 = vmatpush1.bf16.msra.mxu0 %v1043
    %1588 = vmatprep.subr.bf16.mxu0 %v1040
    %1589 = vmatpush1.bf16.msra.mxu0 %v1039
    %1590 = vmatprep.subr.bf16.mxu0 %v1100
    %1591 = vmatpush2.bf16.msra.mxu0 %v1099
    %1592 = vmatprep.subr.bf16.mxu0 %v1096
    %1593 = vmatpush2.bf16.msra.mxu0 %v1095
    %1594 = vmatprep.subr.bf16.mxu0 %v1092
    %1595 = vmatpush2.bf16.msra.mxu0 %v1091
    %1596 = vmatprep.subr.bf16.mxu0 %v1088
    %1597 = vmatpush2.bf16.msra.mxu0 %v1087
    %1598 = vmatprep.subr.bf16.mxu0 %v1084
    %1599 = vmatpush2.bf16.msra.mxu0 %v1083
    %1600 = vmatprep.subr.bf16.mxu0 %v1080
    %1601 = vmatpush2.bf16.msra.mxu0 %v1079
    %1602 = vmatprep.subr.bf16.mxu0 %v1076
    %1603 = vmatpush2.bf16.msra.mxu0 %v1075
    %1604 = vmatprep.subr.bf16.mxu0 %v1072
    %1605 = vmatpush2.bf16.msra.mxu0 %v1071
    %1606 = vmatprep.mubr.bf16.mxu0 %v185
    %1607 = vmatmul.mubr.bf16.gmra.mxu0 %v184
    %v1608 = vpop.f32.mrf.mxu0
    %v1609 = vadd.f32 %v1568, %v1608
    %v1610 = vpop.f32.mrf.mxu0
    %v1611 = vadd.f32 %v1570, %v1610
    %v1612 = vpop.f32.mrf.mxu0
    %v1613 = vpop.f32.mrf.mxu0
    %1614 = vdwg.mxu0
    %1615 = vmatprep.subr.bf16.mxu0 %v1132
    %1616 = vmatpush1.bf16.msra.mxu0 %v1131
    %1617 = vmatprep.subr.bf16.mxu0 %v1128
    %1618 = vmatpush1.bf16.msra.mxu0 %v1127
    %1619 = vmatprep.subr.bf16.mxu0 %v1124
    %1620 = vmatpush1.bf16.msra.mxu0 %v1123
    %1621 = vmatprep.subr.bf16.mxu0 %v1120
    %1622 = vmatpush1.bf16.msra.mxu0 %v1119
    %1623 = vmatprep.subr.bf16.mxu0 %v1116
    %1624 = vmatpush1.bf16.msra.mxu0 %v1115
    %1625 = vmatprep.subr.bf16.mxu0 %v1112
    %1626 = vmatpush1.bf16.msra.mxu0 %v1111
    %1627 = vmatprep.subr.bf16.mxu0 %v1108
    %1628 = vmatpush1.bf16.msra.mxu0 %v1107
    %1629 = vmatprep.subr.bf16.mxu0 %v1104
    %1630 = vmatpush1.bf16.msra.mxu0 %v1103
    %1631 = vmatprep.subr.bf16.mxu0 %v1164
    %1632 = vmatpush2.bf16.msra.mxu0 %v1163
    %1633 = vmatprep.subr.bf16.mxu0 %v1160
    %1634 = vmatpush2.bf16.msra.mxu0 %v1159
    %1635 = vmatprep.subr.bf16.mxu0 %v1156
    %1636 = vmatpush2.bf16.msra.mxu0 %v1155
    %1637 = vmatprep.subr.bf16.mxu0 %v1152
    %1638 = vmatpush2.bf16.msra.mxu0 %v1151
    %1639 = vmatprep.subr.bf16.mxu0 %v1148
    %1640 = vmatpush2.bf16.msra.mxu0 %v1147
    %1641 = vmatprep.subr.bf16.mxu0 %v1144
    %1642 = vmatpush2.bf16.msra.mxu0 %v1143
    %1643 = vmatprep.subr.bf16.mxu0 %v1140
    %1644 = vmatpush2.bf16.msra.mxu0 %v1139
    %1645 = vmatprep.subr.bf16.mxu0 %v1136
    %1646 = vmatpush2.bf16.msra.mxu0 %v1135
    %1647 = vmatprep.mubr.bf16.mxu0 %v187
    %1648 = vmatmul.mubr.bf16.gmra.mxu0 %v186
    %v1649 = vpop.f32.mrf.mxu0
    %v1650 = vadd.f32 %v1609, %v1649
    %v1651 = vpop.f32.mrf.mxu0
    %v1652 = vadd.f32 %v1611, %v1651
    %v1653 = vpop.f32.mrf.mxu0
    %v1654 = vpop.f32.mrf.mxu0
    %1655 = vdwg.mxu0
    %1656 = vmatprep.subr.bf16.mxu0 0
    %1657 = vmatpush1.bf16.msra.mxu0 0
    %1658 = vmatprep.subr.bf16.mxu0 0
    %1659 = vmatpush1.bf16.msra.mxu0 0
    %1660 = vmatprep.subr.bf16.mxu0 0
    %1661 = vmatpush1.bf16.msra.mxu0 0
    %1662 = vmatprep.subr.bf16.mxu0 0
    %1663 = vmatpush1.bf16.msra.mxu0 0
    %1664 = vmatprep.subr.bf16.mxu0 0
    %1665 = vmatpush1.bf16.msra.mxu0 0
    %1666 = vmatprep.subr.bf16.mxu0 0
    %1667 = vmatpush1.bf16.msra.mxu0 0
    %1668 = vmatprep.subr.bf16.mxu0 0
    %1669 = vmatpush1.bf16.msra.mxu0 0
    %1670 = vmatprep.subr.bf16.mxu0 %v1168
    %1671 = vmatpush1.bf16.msra.mxu0 %v1167
    %1672 = vmatprep.subr.bf16.mxu0 0
    %1673 = vmatpush2.bf16.msra.mxu0 0
    %1674 = vmatprep.subr.bf16.mxu0 0
    %1675 = vmatpush2.bf16.msra.mxu0 0
    %1676 = vmatprep.subr.bf16.mxu0 0
    %1677 = vmatpush2.bf16.msra.mxu0 0
    %1678 = vmatprep.subr.bf16.mxu0 0
    %1679 = vmatpush2.bf16.msra.mxu0 0
    %1680 = vmatprep.subr.bf16.mxu0 0
    %1681 = vmatpush2.bf16.msra.mxu0 0
    %1682 = vmatprep.subr.bf16.mxu0 0
    %1683 = vmatpush2.bf16.msra.mxu0 0
    %1684 = vmatprep.subr.bf16.mxu0 0
    %1685 = vmatpush2.bf16.msra.mxu0 0
    %1686 = vmatprep.subr.bf16.mxu0 0
    %1687 = vmatpush2.bf16.msra.mxu0 0
    %1688 = vmatprep.mubr.bf16.mxu0 0
    %1689 = vmatmul.mubr.bf16.gmra.mxu0 %v1367
    %v1690 = vpop.f32.mrf.mxu0
    %v1691 = vadd.f32 %v1650, %v1690
    %v1692 = vpop.f32.mrf.mxu0
    %v1693 = vadd.f32 %v1652, %v1692
    %v1694 = vpop.f32.mrf.mxu0
    %v1695 = vpop.f32.mrf.mxu0
    %1696 = vdwg.mxu0
    %v1697 = vpack.c.bf16 %v1527, %v1527
    %v1698 = vpack.c.bf16 %v1529, %v1529
    %v1699 = vpack.c.bf16 %v1691, %v1691
    %v1700 = vpack.c.bf16 %v1693, %v1693
    %v1701 = vld [vmem:[%s2] sm:$0xf]
    %v1704 = vunpack.c.l.s4 1966171168
    %v1705 = vunpack.c.0.s8 %v1704
    %v1706 = vlaneseq
    %v1707 = vshrl.u32 %v1706, 7
    %v1708 = vsub.s32 %v1705, %v1707
    %v1709 = vrot.slane %v1701, %v1708
    %v1710 = vcombine.high %v1709, %v1709
    %v1712 = vunpack.c.l.s4 1966171168
    %v1713 = vunpack.c.0.s8 %v1712
    %v1714 = vlaneseq
    %v1715 = vshrl.u32 %v1714, 7
    %v1716 = vsub.s32 %v1713, %v1715
    %v1717 = vrot.slane %v1709, %v1716
    %v1719 = vunpack.c.l.s4 1966171168
    %v1720 = vunpack.c.0.s8 %v1719
    %v1721 = vlaneseq
    %v1722 = vshrl.u32 %v1721, 7
    %v1723 = vsub.s32 %v1720, %v1722
    %v1724 = vrot.slane %v1710, %v1723
    %v1725 = vcombine.high %v1717, %v1717
    %v1726 = vcombine.high %v1724, %v1724
    %v1728 = vpack.i.b16 %v1717, %v1717
    %v1730 = vlaneseq
    %v1731 = vshrl.u32 %v1730, 7
    %v1732 = vsub.s32 0, %v1731
    %v1733 = vrot.slane %v1728, %v1732
    %v1735 = vpack.i.b16 %v1724, %v1724
    %v1737 = vlaneseq
    %v1738 = vshrl.u32 %v1737, 7
    %v1739 = vsub.s32 0, %v1738
    %v1740 = vrot.slane %v1735, %v1739
    %v1742 = vpack.i.b16 %v1725, %v1725
    %v1744 = vlaneseq
    %v1745 = vshrl.u32 %v1744, 7
    %v1746 = vsub.s32 0, %v1745
    %v1747 = vrot.slane %v1742, %v1746
    %v1749 = vpack.i.b16 %v1726, %v1726
    %v1751 = vlaneseq
    %v1752 = vshrl.u32 %v1751, 7
    %v1753 = vsub.s32 0, %v1752
    %v1754 = vrot.slane %v1749, %v1753
    %v1755 = vadd.bf16 %v1697, %v1733
    %v1756 = vadd.bf16 %v1698, %v1740
    %v1757 = vadd.bf16 %v1699, %v1747
    %v1758 = vadd.bf16 %v1700, %v1754
    %v1759 = vmax.bf16 %v1755, 0
    %v1760 = vmax.bf16 %v1756, 0
    %v1761 = vmax.bf16 %v1757, 0
    %v1762 = vmax.bf16 %v1758, 0
    %v1763 = vld [vmem:[#allocation4] sm:$0xf]
    %v1764 = vld [vmem:[#allocation4 + $0x4] sm:$0xf]
    %v1765 = vld [vmem:[#allocation4 + $0x8] sm:$0xf]
    %v1766 = vld [vmem:[#allocation4 + $0xc] sm:$0xf]
    %v1767 = vld [vmem:[#allocation4 + $0x10] sm:$0xf]
    %v1768 = vld [vmem:[#allocation4 + $0x14] sm:$0xf]
    %v1769 = vld [vmem:[#allocation4 + $0x18] sm:$0xf]
    %v1770 = vld [vmem:[#allocation4 + $0x1c] sm:$0xf]
    %v1771 = vld [vmem:[#allocation4 + $0x20] sm:$0xf]
    %v1772 = vld [vmem:[#allocation4 + $0x24] sm:$0xf]
    %v1773 = vld [vmem:[#allocation4 + $0x28] sm:$0xf]
    %v1774 = vld [vmem:[#allocation4 + $0x2c] sm:$0xf]
    %v1775 = vld [vmem:[#allocation4 + $0x30] sm:$0xf]
    %v1776 = vld [vmem:[#allocation4 + $0x34] sm:$0xf]
    %v1777 = vld [vmem:[#allocation4 + $0x38] sm:$0xf]
    %v1778 = vld [vmem:[#allocation4 + $0x3c] sm:$0xf]
    %v1779 = vld [vmem:[#allocation4 + $0x40] sm:$0xf]
    %v1780 = vld [vmem:[#allocation4 + $0x44] sm:$0xf]
    %v1781 = vld [vmem:[#allocation4 + $0x48] sm:$0xf]
    %v1782 = vld [vmem:[#allocation4 + $0x4c] sm:$0xf]
    %v1783 = vld [vmem:[#allocation4 + $0x50] sm:$0xf]
    %v1784 = vld [vmem:[#allocation4 + $0x54] sm:$0xf]
    %v1785 = vld [vmem:[#allocation4 + $0x58] sm:$0xf]
    %v1786 = vld [vmem:[#allocation4 + $0x5c] sm:$0xf]
    %v1787 = vld [vmem:[#allocation4 + $0x60] sm:$0xf]
    %v1788 = vld [vmem:[#allocation4 + $0x64] sm:$0xf]
    %v1789 = vld [vmem:[#allocation4 + $0x68] sm:$0xf]
    %v1790 = vld [vmem:[#allocation4 + $0x6c] sm:$0xf]
    %v1791 = vld [vmem:[#allocation4 + $0x70] sm:$0xf]
    %v1792 = vld [vmem:[#allocation4 + $0x74] sm:$0xf]
    %v1793 = vld [vmem:[#allocation4 + $0x78] sm:$0xf]
    %v1794 = vld [vmem:[#allocation4 + $0x7c] sm:$0xf]
    %v1795 = vld [vmem:[#allocation4 + $0x80] sm:$0xf]
    %v1796 = vld [vmem:[#allocation4 + $0x84] sm:$0xf]
    %v1797 = vld [vmem:[#allocation4 + $0x88] sm:$0xf]
    %v1798 = vld [vmem:[#allocation4 + $0x8c] sm:$0xf]
    %v1799 = vld [vmem:[#allocation4 + $0x90] sm:$0xf]
    %v1800 = vld [vmem:[#allocation4 + $0x94] sm:$0xf]
    %v1801 = vld [vmem:[#allocation4 + $0x98] sm:$0xf]
    %v1802 = vld [vmem:[#allocation4 + $0x9c] sm:$0xf]
    %v1803 = vld [vmem:[#allocation4 + $0xa0] sm:$0xf]
    %v1804 = vld [vmem:[#allocation4 + $0xa4] sm:$0xf]
    %v1805 = vld [vmem:[#allocation4 + $0xa8] sm:$0xf]
    %v1806 = vld [vmem:[#allocation4 + $0xac] sm:$0xf]
    %v1807 = vld [vmem:[#allocation4 + $0xb0] sm:$0xf]
    %v1808 = vld [vmem:[#allocation4 + $0xb4] sm:$0xf]
    %v1809 = vld [vmem:[#allocation4 + $0xb8] sm:$0xf]
    %v1810 = vld [vmem:[#allocation4 + $0xbc] sm:$0xf]
    %v1811 = vld [vmem:[#allocation4 + $0xc0] sm:$0xf]
    %v1812 = vld [vmem:[#allocation4 + $0xc4] sm:$0xf]
    %v1813 = vld [vmem:[#allocation4 + $0xc8] sm:$0xf]
    %v1814 = vld [vmem:[#allocation4 + $0xcc] sm:$0xf]
    %v1815 = vld [vmem:[#allocation4 + $0xd0] sm:$0xf]
    %v1816 = vld [vmem:[#allocation4 + $0xd4] sm:$0xf]
    %v1817 = vld [vmem:[#allocation4 + $0xd8] sm:$0xf]
    %v1818 = vld [vmem:[#allocation4 + $0xdc] sm:$0xf]
    %v1819 = vld [vmem:[#allocation4 + $0xe0] sm:$0xf]
    %v1820 = vld [vmem:[#allocation4 + $0xe4] sm:$0xf]
    %v1821 = vld [vmem:[#allocation4 + $0xe8] sm:$0xf]
    %v1822 = vld [vmem:[#allocation4 + $0xec] sm:$0xf]
    %v1823 = vld [vmem:[#allocation4 + $0xf0] sm:$0xf]
    %v1824 = vld [vmem:[#allocation4 + $0xf4] sm:$0xf]
    %v1825 = vld [vmem:[#allocation4 + $0xf8] sm:$0xf]
    %v1826 = vld [vmem:[#allocation4 + $0xfc] sm:$0xf]
    %v1891 = vunpack.c.l.b16 %v1763
    %v1892 = vunpack.c.l.b16 %v1764
    %v1893 = vunpack.c.l.b16 %v1765
    %v1894 = vunpack.c.l.b16 %v1766
    %v1895 = vunpack.c.l.b16 %v1767
    %v1896 = vunpack.c.l.b16 %v1768
    %v1897 = vunpack.c.l.b16 %v1769
    %v1898 = vunpack.c.l.b16 %v1770
    %v1899 = vunpack.c.l.b16 %v1771
    %v1900 = vunpack.c.l.b16 %v1772
    %v1901 = vunpack.c.l.b16 %v1773
    %v1902 = vunpack.c.l.b16 %v1774
    %v1903 = vunpack.c.l.b16 %v1775
    %v1904 = vunpack.c.l.b16 %v1776
    %v1905 = vunpack.c.l.b16 %v1777
    %v1906 = vunpack.c.l.b16 %v1778
    %v1907 = vunpack.c.l.b16 %v1779
    %v1908 = vunpack.c.l.b16 %v1780
    %v1909 = vunpack.c.l.b16 %v1781
    %v1910 = vunpack.c.l.b16 %v1782
    %v1911 = vunpack.c.l.b16 %v1783
    %v1912 = vunpack.c.l.b16 %v1784
    %v1913 = vunpack.c.l.b16 %v1785
    %v1914 = vunpack.c.l.b16 %v1786
    %v1915 = vunpack.c.l.b16 %v1787
    %v1916 = vunpack.c.l.b16 %v1788
    %v1917 = vunpack.c.l.b16 %v1789
    %v1918 = vunpack.c.l.b16 %v1790
    %v1919 = vunpack.c.l.b16 %v1791
    %v1920 = vunpack.c.l.b16 %v1792
    %v1921 = vunpack.c.l.b16 %v1793
    %v1922 = vunpack.c.l.b16 %v1794
    %v1923 = vunpack.c.l.b16 %v1795
    %v1924 = vunpack.c.l.b16 %v1796
    %v1925 = vunpack.c.l.b16 %v1797
    %v1926 = vunpack.c.l.b16 %v1798
    %v1927 = vunpack.c.l.b16 %v1799
    %v1928 = vunpack.c.l.b16 %v1800
    %v1929 = vunpack.c.l.b16 %v1801
    %v1930 = vunpack.c.l.b16 %v1802
    %v1931 = vunpack.c.l.b16 %v1803
    %v1932 = vunpack.c.l.b16 %v1804
    %v1933 = vunpack.c.l.b16 %v1805
    %v1934 = vunpack.c.l.b16 %v1806
    %v1935 = vunpack.c.l.b16 %v1807
    %v1936 = vunpack.c.l.b16 %v1808
    %v1937 = vunpack.c.l.b16 %v1809
    %v1938 = vunpack.c.l.b16 %v1810
    %v1939 = vunpack.c.l.b16 %v1811
    %v1940 = vunpack.c.l.b16 %v1812
    %v1941 = vunpack.c.l.b16 %v1813
    %v1942 = vunpack.c.l.b16 %v1814
    %v1943 = vunpack.c.l.b16 %v1815
    %v1944 = vunpack.c.l.b16 %v1816
    %v1945 = vunpack.c.l.b16 %v1817
    %v1946 = vunpack.c.l.b16 %v1818
    %v1947 = vunpack.c.l.b16 %v1819
    %v1948 = vunpack.c.l.b16 %v1820
    %v1949 = vunpack.c.l.b16 %v1821
    %v1950 = vunpack.c.l.b16 %v1822
    %v1951 = vunpack.c.l.b16 %v1823
    %v1952 = vunpack.c.l.b16 %v1824
    %v1953 = vunpack.c.l.b16 %v1825
    %v1954 = vunpack.c.l.b16 %v1826
    %v1955 = vpack.c.b16 %v1892, %v1891
    %v1956 = vpack.c.b16 %v1894, %v1893
    %v1957 = vpack.c.b16 %v1896, %v1895
    %v1958 = vpack.c.b16 %v1898, %v1897
    %v1959 = vpack.c.b16 %v1900, %v1899
    %v1960 = vpack.c.b16 %v1902, %v1901
    %v1961 = vpack.c.b16 %v1904, %v1903
    %v1962 = vpack.c.b16 %v1906, %v1905
    %v1963 = vpack.c.b16 %v1908, %v1907
    %v1964 = vpack.c.b16 %v1910, %v1909
    %v1965 = vpack.c.b16 %v1912, %v1911
    %v1966 = vpack.c.b16 %v1914, %v1913
    %v1967 = vpack.c.b16 %v1916, %v1915
    %v1968 = vpack.c.b16 %v1918, %v1917
    %v1969 = vpack.c.b16 %v1920, %v1919
    %v1970 = vpack.c.b16 %v1922, %v1921
    %v1971 = vpack.c.b16 %v1924, %v1923
    %v1972 = vpack.c.b16 %v1926, %v1925
    %v1973 = vpack.c.b16 %v1928, %v1927
    %v1974 = vpack.c.b16 %v1930, %v1929
    %v1975 = vpack.c.b16 %v1932, %v1931
    %v1976 = vpack.c.b16 %v1934, %v1933
    %v1977 = vpack.c.b16 %v1936, %v1935
    %v1978 = vpack.c.b16 %v1938, %v1937
    %v1979 = vpack.c.b16 %v1940, %v1939
    %v1980 = vpack.c.b16 %v1942, %v1941
    %v1981 = vpack.c.b16 %v1944, %v1943
    %v1982 = vpack.c.b16 %v1946, %v1945
    %v1983 = vpack.c.b16 %v1948, %v1947
    %v1984 = vpack.c.b16 %v1950, %v1949
    %v1985 = vpack.c.b16 %v1952, %v1951
    %v1986 = vpack.c.b16 %v1954, %v1953
    %2019 = vmatprep.subr.bf16.mxu0 0
    %2020 = vmatpush1.bf16.msra.mxu0 %v1962
    %2021 = vmatprep.subr.bf16.mxu0 0
    %2022 = vmatpush1.bf16.msra.mxu0 %v1961
    %2023 = vmatprep.subr.bf16.mxu0 0
    %2024 = vmatpush1.bf16.msra.mxu0 %v1960
    %2025 = vmatprep.subr.bf16.mxu0 0
    %2026 = vmatpush1.bf16.msra.mxu0 %v1959
    %2027 = vmatprep.subr.bf16.mxu0 0
    %2028 = vmatpush1.bf16.msra.mxu0 %v1958
    %2029 = vmatprep.subr.bf16.mxu0 0
    %2030 = vmatpush1.bf16.msra.mxu0 %v1957
    %2031 = vmatprep.subr.bf16.mxu0 0
    %2032 = vmatpush1.bf16.msra.mxu0 %v1956
    %2033 = vmatprep.subr.bf16.mxu0 0
    %2034 = vmatpush1.bf16.msra.mxu0 %v1955
    %2035 = vmatprep.subr.bf16.mxu0 0
    %2036 = vmatpush2.bf16.msra.mxu0 %v1970
    %2037 = vmatprep.subr.bf16.mxu0 0
    %2038 = vmatpush2.bf16.msra.mxu0 %v1969
    %2039 = vmatprep.subr.bf16.mxu0 0
    %2040 = vmatpush2.bf16.msra.mxu0 %v1968
    %2041 = vmatprep.subr.bf16.mxu0 0
    %2042 = vmatpush2.bf16.msra.mxu0 %v1967
    %2043 = vmatprep.subr.bf16.mxu0 0
    %2044 = vmatpush2.bf16.msra.mxu0 %v1966
    %2045 = vmatprep.subr.bf16.mxu0 0
    %2046 = vmatpush2.bf16.msra.mxu0 %v1965
    %2047 = vmatprep.subr.bf16.mxu0 0
    %2048 = vmatpush2.bf16.msra.mxu0 %v1964
    %2049 = vmatprep.subr.bf16.mxu0 0
    %2050 = vmatpush2.bf16.msra.mxu0 %v1963
    %2051 = vmatprep.mubr.bf16.mxu0 %v1760
    %2052 = vmatmul.mubr.bf16.gmra.mxu0 %v1759
    %v2053 = vpop.f32.mrf.mxu0
    %v2054 = vadd.f32 0.0, %v2053
    %v2055 = vpop.f32.mrf.mxu0
    %v2056 = vpop.f32.mrf.mxu0
    %v2057 = vpop.f32.mrf.mxu0
    %2058 = vdwg.mxu0
    %2059 = vmatprep.subr.bf16.mxu0 0
    %2060 = vmatpush1.bf16.msra.mxu0 %v1978
    %2061 = vmatprep.subr.bf16.mxu0 0
    %2062 = vmatpush1.bf16.msra.mxu0 %v1977
    %2063 = vmatprep.subr.bf16.mxu0 0
    %2064 = vmatpush1.bf16.msra.mxu0 %v1976
    %2065 = vmatprep.subr.bf16.mxu0 0
    %2066 = vmatpush1.bf16.msra.mxu0 %v1975
    %2067 = vmatprep.subr.bf16.mxu0 0
    %2068 = vmatpush1.bf16.msra.mxu0 %v1974
    %2069 = vmatprep.subr.bf16.mxu0 0
    %2070 = vmatpush1.bf16.msra.mxu0 %v1973
    %2071 = vmatprep.subr.bf16.mxu0 0
    %2072 = vmatpush1.bf16.msra.mxu0 %v1972
    %2073 = vmatprep.subr.bf16.mxu0 0
    %2074 = vmatpush1.bf16.msra.mxu0 %v1971
    %2075 = vmatprep.subr.bf16.mxu0 0
    %2076 = vmatpush2.bf16.msra.mxu0 %v1986
    %2077 = vmatprep.subr.bf16.mxu0 0
    %2078 = vmatpush2.bf16.msra.mxu0 %v1985
    %2079 = vmatprep.subr.bf16.mxu0 0
    %2080 = vmatpush2.bf16.msra.mxu0 %v1984
    %2081 = vmatprep.subr.bf16.mxu0 0
    %2082 = vmatpush2.bf16.msra.mxu0 %v1983
    %2083 = vmatprep.subr.bf16.mxu0 0
    %2084 = vmatpush2.bf16.msra.mxu0 %v1982
    %2085 = vmatprep.subr.bf16.mxu0 0
    %2086 = vmatpush2.bf16.msra.mxu0 %v1981
    %2087 = vmatprep.subr.bf16.mxu0 0
    %2088 = vmatpush2.bf16.msra.mxu0 %v1980
    %2089 = vmatprep.subr.bf16.mxu0 0
    %2090 = vmatpush2.bf16.msra.mxu0 %v1979
    %2091 = vmatprep.mubr.bf16.mxu0 %v1762
    %2092 = vmatmul.mubr.bf16.gmra.mxu0 %v1761
    %v2093 = vpop.f32.mrf.mxu0
    %v2094 = vadd.f32 %v2054, %v2093
    %v2095 = vpop.f32.mrf.mxu0
    %v2096 = vpop.f32.mrf.mxu0
    %v2097 = vpop.f32.mrf.mxu0
    %2098 = vdwg.mxu0
    %v2099 = vpack.c.bf16 %v2094, %v2094
    %v2100 = vld [vmem:[%s4] sm:$0x1]
    %v2102 = vpack.i.b16 %v2100, %v2100
    %v2104 = vlaneseq
    %v2105 = vshrl.u32 %v2104, 7
    %v2106 = vsub.s32 0, %v2105
    %v2107 = vrot.slane %v2102, %v2106
    %v2108 = vadd.bf16 %v2099, %v2107
    %v2109 = vmax.bf16 %v2108, 0
    %v2110 = vld [vmem:[#allocation6] sm:$0xff]
    %v2111 = vld [vmem:[#allocation6 + $0x8] sm:$0xff]
    %v2112 = vld [vmem:[#allocation6 + $0x10] sm:$0xff]
    %v2113 = vld [vmem:[#allocation6 + $0x18] sm:$0xff]
    %v2114 = vld [vmem:[#allocation6 + $0x20] sm:$0xff]
    %v2115 = vld [vmem:[#allocation6 + $0x28] sm:$0xff]
    %v2116 = vld [vmem:[#allocation6 + $0x30] sm:$0xff]
    %v2117 = vld [vmem:[#allocation6 + $0x38] sm:$0xff]
    %v2118 = vld [vmem:[#allocation6 + $0x40] sm:$0xff]
    %v2119 = vld [vmem:[#allocation6 + $0x48] sm:$0xff]
    %v2120 = vld [vmem:[#allocation6 + $0x50] sm:$0xff]
    %v2121 = vld [vmem:[#allocation6 + $0x58] sm:$0xff]
    %v2122 = vld [vmem:[#allocation6 + $0x60] sm:$0xff]
    %v2123 = vld [vmem:[#allocation6 + $0x68] sm:$0xff]
    %v2124 = vld [vmem:[#allocation6 + $0x70] sm:$0xff]
    %v2125 = vld [vmem:[#allocation6 + $0x78] sm:$0xff]
    %v2126 = vld [vmem:[#allocation6 + $0x80] sm:$0xff]
    %v2127 = vld [vmem:[#allocation6 + $0x88] sm:$0xff]
    %v2128 = vld [vmem:[#allocation6 + $0x90] sm:$0xff]
    %v2129 = vld [vmem:[#allocation6 + $0x98] sm:$0xff]
    %v2130 = vld [vmem:[#allocation6 + $0xa0] sm:$0xff]
    %v2131 = vld [vmem:[#allocation6 + $0xa8] sm:$0xff]
    %v2132 = vld [vmem:[#allocation6 + $0xb0] sm:$0xff]
    %v2133 = vld [vmem:[#allocation6 + $0xb8] sm:$0xff]
    %v2134 = vld [vmem:[#allocation6 + $0xc0] sm:$0xff]
    %v2135 = vld [vmem:[#allocation6 + $0xc8] sm:$0xff]
    %v2136 = vld [vmem:[#allocation6 + $0xd0] sm:$0xff]
    %v2137 = vld [vmem:[#allocation6 + $0xd8] sm:$0xff]
    %v2138 = vld [vmem:[#allocation6 + $0xe0] sm:$0xff]
    %v2139 = vld [vmem:[#allocation6 + $0xe8] sm:$0xff]
    %v2140 = vld [vmem:[#allocation6 + $0xf0] sm:$0xff]
    %v2141 = vld [vmem:[#allocation6 + $0xf8] sm:$0xff]
    %v2174 = vunpack.c.l.b16 %v2110
    %v2175 = vunpack.c.h.b16 %v2110
    %v2176 = vunpack.c.l.b16 %v2111
    %v2177 = vunpack.c.h.b16 %v2111
    %v2178 = vunpack.c.l.b16 %v2112
    %v2179 = vunpack.c.h.b16 %v2112
    %v2180 = vunpack.c.l.b16 %v2113
    %v2181 = vunpack.c.h.b16 %v2113
    %v2182 = vunpack.c.l.b16 %v2114
    %v2183 = vunpack.c.h.b16 %v2114
    %v2184 = vunpack.c.l.b16 %v2115
    %v2185 = vunpack.c.h.b16 %v2115
    %v2186 = vunpack.c.l.b16 %v2116
    %v2187 = vunpack.c.h.b16 %v2116
    %v2188 = vunpack.c.l.b16 %v2117
    %v2189 = vunpack.c.h.b16 %v2117
    %v2190 = vunpack.c.l.b16 %v2118
    %v2191 = vunpack.c.h.b16 %v2118
    %v2192 = vunpack.c.l.b16 %v2119
    %v2193 = vunpack.c.h.b16 %v2119
    %v2194 = vunpack.c.l.b16 %v2120
    %v2195 = vunpack.c.h.b16 %v2120
    %v2196 = vunpack.c.l.b16 %v2121
    %v2197 = vunpack.c.h.b16 %v2121
    %v2198 = vunpack.c.l.b16 %v2122
    %v2199 = vunpack.c.h.b16 %v2122
    %v2200 = vunpack.c.l.b16 %v2123
    %v2201 = vunpack.c.h.b16 %v2123
    %v2202 = vunpack.c.l.b16 %v2124
    %v2203 = vunpack.c.h.b16 %v2124
    %v2204 = vunpack.c.l.b16 %v2125
    %v2205 = vunpack.c.h.b16 %v2125
    %v2206 = vunpack.c.l.b16 %v2126
    %v2207 = vunpack.c.h.b16 %v2126
    %v2208 = vunpack.c.l.b16 %v2127
    %v2209 = vunpack.c.h.b16 %v2127
    %v2210 = vunpack.c.l.b16 %v2128
    %v2211 = vunpack.c.h.b16 %v2128
    %v2212 = vunpack.c.l.b16 %v2129
    %v2213 = vunpack.c.h.b16 %v2129
    %v2214 = vunpack.c.l.b16 %v2130
    %v2215 = vunpack.c.h.b16 %v2130
    %v2216 = vunpack.c.l.b16 %v2131
    %v2217 = vunpack.c.h.b16 %v2131
    %v2218 = vunpack.c.l.b16 %v2132
    %v2219 = vunpack.c.h.b16 %v2132
    %v2220 = vunpack.c.l.b16 %v2133
    %v2221 = vunpack.c.h.b16 %v2133
    %v2222 = vunpack.c.l.b16 %v2134
    %v2223 = vunpack.c.h.b16 %v2134
    %v2224 = vunpack.c.l.b16 %v2135
    %v2225 = vunpack.c.h.b16 %v2135
    %v2226 = vunpack.c.l.b16 %v2136
    %v2227 = vunpack.c.h.b16 %v2136
    %v2228 = vunpack.c.l.b16 %v2137
    %v2229 = vunpack.c.h.b16 %v2137
    %v2230 = vunpack.c.l.b16 %v2138
    %v2231 = vunpack.c.h.b16 %v2138
    %v2232 = vunpack.c.l.b16 %v2139
    %v2233 = vunpack.c.h.b16 %v2139
    %v2234 = vunpack.c.l.b16 %v2140
    %v2235 = vunpack.c.h.b16 %v2140
    %v2236 = vunpack.c.l.b16 %v2141
    %v2237 = vunpack.c.h.b16 %v2141
    %v2238 = vpack.c.b16 %v2178, %v2174
    %v2239 = vpack.c.b16 %v2179, %v2175
    %v2240 = vpack.c.b16 %v2180, %v2176
    %v2241 = vpack.c.b16 %v2181, %v2177
    %v2242 = vpack.c.b16 %v2186, %v2182
    %v2243 = vpack.c.b16 %v2187, %v2183
    %v2244 = vpack.c.b16 %v2188, %v2184
    %v2245 = vpack.c.b16 %v2189, %v2185
    %v2246 = vpack.c.b16 %v2194, %v2190
    %v2247 = vpack.c.b16 %v2195, %v2191
    %v2248 = vpack.c.b16 %v2196, %v2192
    %v2249 = vpack.c.b16 %v2197, %v2193
    %v2250 = vpack.c.b16 %v2202, %v2198
    %v2251 = vpack.c.b16 %v2203, %v2199
    %v2252 = vpack.c.b16 %v2204, %v2200
    %v2253 = vpack.c.b16 %v2205, %v2201
    %v2254 = vpack.c.b16 %v2210, %v2206
    %v2255 = vpack.c.b16 %v2211, %v2207
    %v2256 = vpack.c.b16 %v2212, %v2208
    %v2257 = vpack.c.b16 %v2213, %v2209
    %v2258 = vpack.c.b16 %v2218, %v2214
    %v2259 = vpack.c.b16 %v2219, %v2215
    %v2260 = vpack.c.b16 %v2220, %v2216
    %v2261 = vpack.c.b16 %v2221, %v2217
    %v2262 = vpack.c.b16 %v2226, %v2222
    %v2263 = vpack.c.b16 %v2227, %v2223
    %v2264 = vpack.c.b16 %v2228, %v2224
    %v2265 = vpack.c.b16 %v2229, %v2225
    %v2266 = vpack.c.b16 %v2234, %v2230
    %v2267 = vpack.c.b16 %v2235, %v2231
    %v2268 = vpack.c.b16 %v2236, %v2232
    %v2269 = vpack.c.b16 %v2237, %v2233
    %2302 = vmatprep.subr.bf16.mxu0 %v2267
    %2303 = vmatpush1.bf16.msra.mxu0 %v2266
    %2304 = vmatprep.subr.bf16.mxu0 %v2263
    %2305 = vmatpush1.bf16.msra.mxu0 %v2262
    %2306 = vmatprep.subr.bf16.mxu0 %v2259
    %2307 = vmatpush1.bf16.msra.mxu0 %v2258
    %2308 = vmatprep.subr.bf16.mxu0 %v2255
    %2309 = vmatpush1.bf16.msra.mxu0 %v2254
    %2310 = vmatprep.subr.bf16.mxu0 %v2251
    %2311 = vmatpush1.bf16.msra.mxu0 %v2250
    %2312 = vmatprep.subr.bf16.mxu0 %v2247
    %2313 = vmatpush1.bf16.msra.mxu0 %v2246
    %2314 = vmatprep.subr.bf16.mxu0 %v2243
    %2315 = vmatpush1.bf16.msra.mxu0 %v2242
    %2316 = vmatprep.subr.bf16.mxu0 %v2239
    %2317 = vmatpush1.bf16.msra.mxu0 %v2238
    %2318 = vmatprep.subr.bf16.mxu0 0
    %2319 = vmatpush2.bf16.msra.mxu0 0
    %2320 = vmatprep.subr.bf16.mxu0 0
    %2321 = vmatpush2.bf16.msra.mxu0 0
    %2322 = vmatprep.subr.bf16.mxu0 0
    %2323 = vmatpush2.bf16.msra.mxu0 0
    %2324 = vmatprep.subr.bf16.mxu0 0
    %2325 = vmatpush2.bf16.msra.mxu0 0
    %2326 = vmatprep.subr.bf16.mxu0 0
    %2327 = vmatpush2.bf16.msra.mxu0 0
    %2328 = vmatprep.subr.bf16.mxu0 0
    %2329 = vmatpush2.bf16.msra.mxu0 0
    %2330 = vmatprep.subr.bf16.mxu0 0
    %2331 = vmatpush2.bf16.msra.mxu0 0
    %2332 = vmatprep.subr.bf16.mxu0 0
    %2333 = vmatpush2.bf16.msra.mxu0 0
    %2334 = vmatprep.mubr.bf16.mxu0 0
    %2335 = vmatmul.mubr.bf16.gmra.mxu0 %v2109
    %v2336 = vpop.f32.mrf.mxu0
    %v2337 = vadd.f32 0.0, %v2336
    %v2338 = vpop.f32.mrf.mxu0
    %v2339 = vadd.f32 0.0, %v2338
    %v2340 = vpop.f32.mrf.mxu0
    %v2341 = vpop.f32.mrf.mxu0
    %2342 = vdwg.mxu0
    %2343 = vmatprep.subr.bf16.mxu0 %v2269
    %2344 = vmatpush1.bf16.msra.mxu0 %v2268
    %2345 = vmatprep.subr.bf16.mxu0 %v2265
    %2346 = vmatpush1.bf16.msra.mxu0 %v2264
    %2347 = vmatprep.subr.bf16.mxu0 %v2261
    %2348 = vmatpush1.bf16.msra.mxu0 %v2260
    %2349 = vmatprep.subr.bf16.mxu0 %v2257
    %2350 = vmatpush1.bf16.msra.mxu0 %v2256
    %2351 = vmatprep.subr.bf16.mxu0 %v2253
    %2352 = vmatpush1.bf16.msra.mxu0 %v2252
    %2353 = vmatprep.subr.bf16.mxu0 %v2249
    %2354 = vmatpush1.bf16.msra.mxu0 %v2248
    %2355 = vmatprep.subr.bf16.mxu0 %v2245
    %2356 = vmatpush1.bf16.msra.mxu0 %v2244
    %2357 = vmatprep.subr.bf16.mxu0 %v2241
    %2358 = vmatpush1.bf16.msra.mxu0 %v2240
    %2359 = vmatprep.subr.bf16.mxu0 0
    %2360 = vmatpush2.bf16.msra.mxu0 0
    %2361 = vmatprep.subr.bf16.mxu0 0
    %2362 = vmatpush2.bf16.msra.mxu0 0
    %2363 = vmatprep.subr.bf16.mxu0 0
    %2364 = vmatpush2.bf16.msra.mxu0 0
    %2365 = vmatprep.subr.bf16.mxu0 0
    %2366 = vmatpush2.bf16.msra.mxu0 0
    %2367 = vmatprep.subr.bf16.mxu0 0
    %2368 = vmatpush2.bf16.msra.mxu0 0
    %2369 = vmatprep.subr.bf16.mxu0 0
    %2370 = vmatpush2.bf16.msra.mxu0 0
    %2371 = vmatprep.subr.bf16.mxu0 0
    %2372 = vmatpush2.bf16.msra.mxu0 0
    %2373 = vmatprep.subr.bf16.mxu0 0
    %2374 = vmatpush2.bf16.msra.mxu0 0
    %2375 = vmatprep.mubr.bf16.mxu0 0
    %2376 = vmatmul.mubr.bf16.gmra.mxu0 %v2109
    %v2377 = vpop.f32.mrf.mxu0
    %v2378 = vadd.f32 0.0, %v2377
    %v2379 = vpop.f32.mrf.mxu0
    %v2380 = vadd.f32 0.0, %v2379
    %v2381 = vpop.f32.mrf.mxu0
    %v2382 = vpop.f32.mrf.mxu0
    %2383 = vdwg.mxu0
    %v2384 = vpack.c.bf16 %v2337, %v2337
    %v2385 = vpack.c.bf16 %v2339, %v2339
    %v2386 = vpack.c.bf16 %v2378, %v2378
    %v2387 = vpack.c.bf16 %v2380, %v2380
    %v2388 = vld [vmem:[%s6] sm:$0xf]
    %v2391 = vunpack.c.l.s4 1966171168
    %v2392 = vunpack.c.0.s8 %v2391
    %v2393 = vlaneseq
    %v2394 = vshrl.u32 %v2393, 7
    %v2395 = vsub.s32 %v2392, %v2394
    %v2396 = vrot.slane %v2388, %v2395
    %v2397 = vcombine.high %v2396, %v2396
    %v2399 = vunpack.c.l.s4 1966171168
    %v2400 = vunpack.c.0.s8 %v2399
    %v2401 = vlaneseq
    %v2402 = vshrl.u32 %v2401, 7
    %v2403 = vsub.s32 %v2400, %v2402
    %v2404 = vrot.slane %v2396, %v2403
    %v2406 = vunpack.c.l.s4 1966171168
    %v2407 = vunpack.c.0.s8 %v2406
    %v2408 = vlaneseq
    %v2409 = vshrl.u32 %v2408, 7
    %v2410 = vsub.s32 %v2407, %v2409
    %v2411 = vrot.slane %v2397, %v2410
    %v2412 = vcombine.high %v2404, %v2404
    %v2413 = vcombine.high %v2411, %v2411
    %v2415 = vpack.i.b16 %v2404, %v2404
    %v2417 = vlaneseq
    %v2418 = vshrl.u32 %v2417, 7
    %v2419 = vsub.s32 0, %v2418
    %v2420 = vrot.slane %v2415, %v2419
    %v2422 = vpack.i.b16 %v2411, %v2411
    %v2424 = vlaneseq
    %v2425 = vshrl.u32 %v2424, 7
    %v2426 = vsub.s32 0, %v2425
    %v2427 = vrot.slane %v2422, %v2426
    %v2429 = vpack.i.b16 %v2412, %v2412
    %v2431 = vlaneseq
    %v2432 = vshrl.u32 %v2431, 7
    %v2433 = vsub.s32 0, %v2432
    %v2434 = vrot.slane %v2429, %v2433
    %v2436 = vpack.i.b16 %v2413, %v2413
    %v2438 = vlaneseq
    %v2439 = vshrl.u32 %v2438, 7
    %v2440 = vsub.s32 0, %v2439
    %v2441 = vrot.slane %v2436, %v2440
    %v2442 = vadd.bf16 %v2384, %v2420
    %v2443 = vadd.bf16 %v2385, %v2427
    %v2444 = vadd.bf16 %v2386, %v2434
    %v2445 = vadd.bf16 %v2387, %v2441
    %v2446 = vmax.bf16 %v2442, 0
    %v2447 = vmax.bf16 %v2443, 0
    %v2448 = vmax.bf16 %v2444, 0
    %v2449 = vmax.bf16 %v2445, 0
    %v2450 = vld [vmem:[#allocation7] sm:$0xf]
    %v2451 = vld [vmem:[#allocation7 + $0x4] sm:$0xf]
    %v2452 = vld [vmem:[#allocation7 + $0x8] sm:$0xf]
    %v2453 = vld [vmem:[#allocation7 + $0xc] sm:$0xf]
    %v2454 = vld [vmem:[#allocation7 + $0x10] sm:$0xf]
    %v2455 = vld [vmem:[#allocation7 + $0x14] sm:$0xf]
    %v2456 = vld [vmem:[#allocation7 + $0x18] sm:$0xf]
    %v2457 = vld [vmem:[#allocation7 + $0x1c] sm:$0xf]
    %v2458 = vld [vmem:[#allocation7 + $0x20] sm:$0xf]
    %v2459 = vld [vmem:[#allocation7 + $0x24] sm:$0xf]
    %v2460 = vld [vmem:[#allocation7 + $0x28] sm:$0xf]
    %v2461 = vld [vmem:[#allocation7 + $0x2c] sm:$0xf]
    %v2462 = vld [vmem:[#allocation7 + $0x30] sm:$0xf]
    %v2463 = vld [vmem:[#allocation7 + $0x34] sm:$0xf]
    %v2464 = vld [vmem:[#allocation7 + $0x38] sm:$0xf]
    %v2465 = vld [vmem:[#allocation7 + $0x3c] sm:$0xf]
    %v2466 = vld [vmem:[#allocation7 + $0x40] sm:$0xf]
    %v2467 = vld [vmem:[#allocation7 + $0x44] sm:$0xf]
    %v2468 = vld [vmem:[#allocation7 + $0x48] sm:$0xf]
    %v2469 = vld [vmem:[#allocation7 + $0x4c] sm:$0xf]
    %v2470 = vld [vmem:[#allocation7 + $0x50] sm:$0xf]
    %v2471 = vld [vmem:[#allocation7 + $0x54] sm:$0xf]
    %v2472 = vld [vmem:[#allocation7 + $0x58] sm:$0xf]
    %v2473 = vld [vmem:[#allocation7 + $0x5c] sm:$0xf]
    %v2474 = vld [vmem:[#allocation7 + $0x60] sm:$0xf]
    %v2475 = vld [vmem:[#allocation7 + $0x64] sm:$0xf]
    %v2476 = vld [vmem:[#allocation7 + $0x68] sm:$0xf]
    %v2477 = vld [vmem:[#allocation7 + $0x6c] sm:$0xf]
    %v2478 = vld [vmem:[#allocation7 + $0x70] sm:$0xf]
    %v2479 = vld [vmem:[#allocation7 + $0x74] sm:$0xf]
    %v2480 = vld [vmem:[#allocation7 + $0x78] sm:$0xf]
    %v2481 = vld [vmem:[#allocation7 + $0x7c] sm:$0xf]
    %v2482 = vld [vmem:[#allocation7 + $0x80] sm:$0xf]
    %v2483 = vld [vmem:[#allocation7 + $0x84] sm:$0xf]
    %v2484 = vld [vmem:[#allocation7 + $0x88] sm:$0xf]
    %v2485 = vld [vmem:[#allocation7 + $0x8c] sm:$0xf]
    %v2486 = vld [vmem:[#allocation7 + $0x90] sm:$0xf]
    %v2487 = vld [vmem:[#allocation7 + $0x94] sm:$0xf]
    %v2488 = vld [vmem:[#allocation7 + $0x98] sm:$0xf]
    %v2489 = vld [vmem:[#allocation7 + $0x9c] sm:$0xf]
    %v2490 = vld [vmem:[#allocation7 + $0xa0] sm:$0xf]
    %v2491 = vld [vmem:[#allocation7 + $0xa4] sm:$0xf]
    %v2492 = vld [vmem:[#allocation7 + $0xa8] sm:$0xf]
    %v2493 = vld [vmem:[#allocation7 + $0xac] sm:$0xf]
    %v2494 = vld [vmem:[#allocation7 + $0xb0] sm:$0xf]
    %v2495 = vld [vmem:[#allocation7 + $0xb4] sm:$0xf]
    %v2496 = vld [vmem:[#allocation7 + $0xb8] sm:$0xf]
    %v2497 = vld [vmem:[#allocation7 + $0xbc] sm:$0xf]
    %v2498 = vld [vmem:[#allocation7 + $0xc0] sm:$0xf]
    %v2499 = vld [vmem:[#allocation7 + $0xc4] sm:$0xf]
    %v2500 = vld [vmem:[#allocation7 + $0xc8] sm:$0xf]
    %v2501 = vld [vmem:[#allocation7 + $0xcc] sm:$0xf]
    %v2502 = vld [vmem:[#allocation7 + $0xd0] sm:$0xf]
    %v2503 = vld [vmem:[#allocation7 + $0xd4] sm:$0xf]
    %v2504 = vld [vmem:[#allocation7 + $0xd8] sm:$0xf]
    %v2505 = vld [vmem:[#allocation7 + $0xdc] sm:$0xf]
    %v2506 = vld [vmem:[#allocation7 + $0xe0] sm:$0xf]
    %v2507 = vld [vmem:[#allocation7 + $0xe4] sm:$0xf]
    %v2508 = vld [vmem:[#allocation7 + $0xe8] sm:$0xf]
    %v2509 = vld [vmem:[#allocation7 + $0xec] sm:$0xf]
    %v2510 = vld [vmem:[#allocation7 + $0xf0] sm:$0xf]
    %v2511 = vld [vmem:[#allocation7 + $0xf4] sm:$0xf]
    %v2512 = vld [vmem:[#allocation7 + $0xf8] sm:$0xf]
    %v2513 = vld [vmem:[#allocation7 + $0xfc] sm:$0xf]
    %v2578 = vunpack.c.l.b16 %v2450
    %v2579 = vunpack.c.l.b16 %v2451
    %v2580 = vunpack.c.l.b16 %v2452
    %v2581 = vunpack.c.l.b16 %v2453
    %v2582 = vunpack.c.l.b16 %v2454
    %v2583 = vunpack.c.l.b16 %v2455
    %v2584 = vunpack.c.l.b16 %v2456
    %v2585 = vunpack.c.l.b16 %v2457
    %v2586 = vunpack.c.l.b16 %v2458
    %v2587 = vunpack.c.l.b16 %v2459
    %v2588 = vunpack.c.l.b16 %v2460
    %v2589 = vunpack.c.l.b16 %v2461
    %v2590 = vunpack.c.l.b16 %v2462
    %v2591 = vunpack.c.l.b16 %v2463
    %v2592 = vunpack.c.l.b16 %v2464
    %v2593 = vunpack.c.l.b16 %v2465
    %v2594 = vunpack.c.l.b16 %v2466
    %v2595 = vunpack.c.l.b16 %v2467
    %v2596 = vunpack.c.l.b16 %v2468
    %v2597 = vunpack.c.l.b16 %v2469
    %v2598 = vunpack.c.l.b16 %v2470
    %v2599 = vunpack.c.l.b16 %v2471
    %v2600 = vunpack.c.l.b16 %v2472
    %v2601 = vunpack.c.l.b16 %v2473
    %v2602 = vunpack.c.l.b16 %v2474
    %v2603 = vunpack.c.l.b16 %v2475
    %v2604 = vunpack.c.l.b16 %v2476
    %v2605 = vunpack.c.l.b16 %v2477
    %v2606 = vunpack.c.l.b16 %v2478
    %v2607 = vunpack.c.l.b16 %v2479
    %v2608 = vunpack.c.l.b16 %v2480
    %v2609 = vunpack.c.l.b16 %v2481
    %v2610 = vunpack.c.l.b16 %v2482
    %v2611 = vunpack.c.l.b16 %v2483
    %v2612 = vunpack.c.l.b16 %v2484
    %v2613 = vunpack.c.l.b16 %v2485
    %v2614 = vunpack.c.l.b16 %v2486
    %v2615 = vunpack.c.l.b16 %v2487
    %v2616 = vunpack.c.l.b16 %v2488
    %v2617 = vunpack.c.l.b16 %v2489
    %v2618 = vunpack.c.l.b16 %v2490
    %v2619 = vunpack.c.l.b16 %v2491
    %v2620 = vunpack.c.l.b16 %v2492
    %v2621 = vunpack.c.l.b16 %v2493
    %v2622 = vunpack.c.l.b16 %v2494
    %v2623 = vunpack.c.l.b16 %v2495
    %v2624 = vunpack.c.l.b16 %v2496
    %v2625 = vunpack.c.l.b16 %v2497
    %v2626 = vunpack.c.l.b16 %v2498
    %v2627 = vunpack.c.l.b16 %v2499
    %v2628 = vunpack.c.l.b16 %v2500
    %v2629 = vunpack.c.l.b16 %v2501
    %v2630 = vunpack.c.l.b16 %v2502
    %v2631 = vunpack.c.l.b16 %v2503
    %v2632 = vunpack.c.l.b16 %v2504
    %v2633 = vunpack.c.l.b16 %v2505
    %v2634 = vunpack.c.l.b16 %v2506
    %v2635 = vunpack.c.l.b16 %v2507
    %v2636 = vunpack.c.l.b16 %v2508
    %v2637 = vunpack.c.l.b16 %v2509
    %v2638 = vunpack.c.l.b16 %v2510
    %v2639 = vunpack.c.l.b16 %v2511
    %v2640 = vunpack.c.l.b16 %v2512
    %v2641 = vunpack.c.l.b16 %v2513
    %v2642 = vpack.c.b16 %v2579, %v2578
    %v2643 = vpack.c.b16 %v2581, %v2580
    %v2644 = vpack.c.b16 %v2583, %v2582
    %v2645 = vpack.c.b16 %v2585, %v2584
    %v2646 = vpack.c.b16 %v2587, %v2586
    %v2647 = vpack.c.b16 %v2589, %v2588
    %v2648 = vpack.c.b16 %v2591, %v2590
    %v2649 = vpack.c.b16 %v2593, %v2592
    %v2650 = vpack.c.b16 %v2595, %v2594
    %v2651 = vpack.c.b16 %v2597, %v2596
    %v2652 = vpack.c.b16 %v2599, %v2598
    %v2653 = vpack.c.b16 %v2601, %v2600
    %v2654 = vpack.c.b16 %v2603, %v2602
    %v2655 = vpack.c.b16 %v2605, %v2604
    %v2656 = vpack.c.b16 %v2607, %v2606
    %v2657 = vpack.c.b16 %v2609, %v2608
    %v2658 = vpack.c.b16 %v2611, %v2610
    %v2659 = vpack.c.b16 %v2613, %v2612
    %v2660 = vpack.c.b16 %v2615, %v2614
    %v2661 = vpack.c.b16 %v2617, %v2616
    %v2662 = vpack.c.b16 %v2619, %v2618
    %v2663 = vpack.c.b16 %v2621, %v2620
    %v2664 = vpack.c.b16 %v2623, %v2622
    %v2665 = vpack.c.b16 %v2625, %v2624
    %v2666 = vpack.c.b16 %v2627, %v2626
    %v2667 = vpack.c.b16 %v2629, %v2628
    %v2668 = vpack.c.b16 %v2631, %v2630
    %v2669 = vpack.c.b16 %v2633, %v2632
    %v2670 = vpack.c.b16 %v2635, %v2634
    %v2671 = vpack.c.b16 %v2637, %v2636
    %v2672 = vpack.c.b16 %v2639, %v2638
    %v2673 = vpack.c.b16 %v2641, %v2640
    %2706 = vmatprep.subr.bf16.mxu0 0
    %2707 = vmatpush1.bf16.msra.mxu0 %v2649
    %2708 = vmatprep.subr.bf16.mxu0 0
    %2709 = vmatpush1.bf16.msra.mxu0 %v2648
    %2710 = vmatprep.subr.bf16.mxu0 0
    %2711 = vmatpush1.bf16.msra.mxu0 %v2647
    %2712 = vmatprep.subr.bf16.mxu0 0
    %2713 = vmatpush1.bf16.msra.mxu0 %v2646
    %2714 = vmatprep.subr.bf16.mxu0 0
    %2715 = vmatpush1.bf16.msra.mxu0 %v2645
    %2716 = vmatprep.subr.bf16.mxu0 0
    %2717 = vmatpush1.bf16.msra.mxu0 %v2644
    %2718 = vmatprep.subr.bf16.mxu0 0
    %2719 = vmatpush1.bf16.msra.mxu0 %v2643
    %2720 = vmatprep.subr.bf16.mxu0 0
    %2721 = vmatpush1.bf16.msra.mxu0 %v2642
    %2722 = vmatprep.subr.bf16.mxu0 0
    %2723 = vmatpush2.bf16.msra.mxu0 %v2657
    %2724 = vmatprep.subr.bf16.mxu0 0
    %2725 = vmatpush2.bf16.msra.mxu0 %v2656
    %2726 = vmatprep.subr.bf16.mxu0 0
    %2727 = vmatpush2.bf16.msra.mxu0 %v2655
    %2728 = vmatprep.subr.bf16.mxu0 0
    %2729 = vmatpush2.bf16.msra.mxu0 %v2654
    %2730 = vmatprep.subr.bf16.mxu0 0
    %2731 = vmatpush2.bf16.msra.mxu0 %v2653
    %2732 = vmatprep.subr.bf16.mxu0 0
    %2733 = vmatpush2.bf16.msra.mxu0 %v2652
    %2734 = vmatprep.subr.bf16.mxu0 0
    %2735 = vmatpush2.bf16.msra.mxu0 %v2651
    %2736 = vmatprep.subr.bf16.mxu0 0
    %2737 = vmatpush2.bf16.msra.mxu0 %v2650
    %2738 = vmatprep.mubr.bf16.mxu0 %v2447
    %2739 = vmatmul.mubr.bf16.gmra.mxu0 %v2446
    %v2740 = vpop.f32.mrf.mxu0
    %v2741 = vadd.f32 0.0, %v2740
    %v2742 = vpop.f32.mrf.mxu0
    %v2743 = vpop.f32.mrf.mxu0
    %v2744 = vpop.f32.mrf.mxu0
    %2745 = vdwg.mxu0
    %2746 = vmatprep.subr.bf16.mxu0 0
    %2747 = vmatpush1.bf16.msra.mxu0 %v2665
    %2748 = vmatprep.subr.bf16.mxu0 0
    %2749 = vmatpush1.bf16.msra.mxu0 %v2664
    %2750 = vmatprep.subr.bf16.mxu0 0
    %2751 = vmatpush1.bf16.msra.mxu0 %v2663
    %2752 = vmatprep.subr.bf16.mxu0 0
    %2753 = vmatpush1.bf16.msra.mxu0 %v2662
    %2754 = vmatprep.subr.bf16.mxu0 0
    %2755 = vmatpush1.bf16.msra.mxu0 %v2661
    %2756 = vmatprep.subr.bf16.mxu0 0
    %2757 = vmatpush1.bf16.msra.mxu0 %v2660
    %2758 = vmatprep.subr.bf16.mxu0 0
    %2759 = vmatpush1.bf16.msra.mxu0 %v2659
    %2760 = vmatprep.subr.bf16.mxu0 0
    %2761 = vmatpush1.bf16.msra.mxu0 %v2658
    %2762 = vmatprep.subr.bf16.mxu0 0
    %2763 = vmatpush2.bf16.msra.mxu0 %v2673
    %2764 = vmatprep.subr.bf16.mxu0 0
    %2765 = vmatpush2.bf16.msra.mxu0 %v2672
    %2766 = vmatprep.subr.bf16.mxu0 0
    %2767 = vmatpush2.bf16.msra.mxu0 %v2671
    %2768 = vmatprep.subr.bf16.mxu0 0
    %2769 = vmatpush2.bf16.msra.mxu0 %v2670
    %2770 = vmatprep.subr.bf16.mxu0 0
    %2771 = vmatpush2.bf16.msra.mxu0 %v2669
    %2772 = vmatprep.subr.bf16.mxu0 0
    %2773 = vmatpush2.bf16.msra.mxu0 %v2668
    %2774 = vmatprep.subr.bf16.mxu0 0
    %2775 = vmatpush2.bf16.msra.mxu0 %v2667
    %2776 = vmatprep.subr.bf16.mxu0 0
    %2777 = vmatpush2.bf16.msra.mxu0 %v2666
    %2778 = vmatprep.mubr.bf16.mxu0 %v2449
    %2779 = vmatmul.mubr.bf16.gmra.mxu0 %v2448
    %v2780 = vpop.f32.mrf.mxu0
    %v2781 = vadd.f32 %v2741, %v2780
    %v2782 = vpop.f32.mrf.mxu0
    %v2783 = vpop.f32.mrf.mxu0
    %v2784 = vpop.f32.mrf.mxu0
    %2785 = vdwg.mxu0
    %v2786 = vpack.c.bf16 %v2781, %v2781
    %v2787 = vld [vmem:[%s8] sm:$0x1]
    %v2789 = vpack.i.b16 %v2787, %v2787
    %v2791 = vlaneseq
    %v2792 = vshrl.u32 %v2791, 7
    %v2793 = vsub.s32 0, %v2792
    %v2794 = vrot.slane %v2789, %v2793
    %v2795 = vadd.bf16 %v2786, %v2794
    %v2798 = vunpack.c.l.s4 1966171168
    %v2799 = vunpack.c.0.s8 %v2798
    %v2800 = vlaneseq
    %v2801 = vshrl.u32 %v2800, 7
    %v2802 = vsub.s32 %v2799, %v2801
    %v2803 = vrot.slane %v2795, %v2802
    %v2804 = vcombine.high %v2803, %v2803
    %v2806 = vunpack.c.l.s4 1966171168
    %v2807 = vunpack.c.0.s8 %v2806
    %v2808 = vlaneseq
    %v2809 = vshrl.u32 %v2808, 7
    %v2810 = vsub.s32 %v2807, %v2809
    %v2811 = vrot.slane %v2803, %v2810
    %v2813 = vunpack.c.l.s4 1966171168
    %v2814 = vunpack.c.0.s8 %v2813
    %v2815 = vlaneseq
    %v2816 = vshrl.u32 %v2815, 7
    %v2817 = vsub.s32 %v2814, %v2816
    %v2818 = vrot.slane %v2804, %v2817
    %v2819 = vcombine.high %v2811, %v2811
    %v2820 = vcombine.high %v2818, %v2818
    %2825 = vst [vmem:[#allocation9] sm:$0x1] %v2811
    %2826 = vst [vmem:[#allocation9 + $0x1] sm:$0x1] %v2818
    %2827 = vst [vmem:[#allocation9 + $0x2] sm:$0x1] %v2819
    %2828 = vst [vmem:[#allocation9 + $0x3] sm:$0x1] %v2820
    // Predicated region
    $region54: #{mlp_forward.1} parent=1 // pred_check
      _
    $region55: #{mlp_forward.1} parent=1 // pred_check_branch
      %2830 = sbr.rel (0) target = $region57
    $region56: #{mlp_forward.1} parent=1 // pred_region
      // Predicated region
      $region58: #{mlp_forward.1} parent=56 // pred_check
        _
      $region59: #{mlp_forward.1} parent=56 // pred_check_branch
        %2832 = sbr.rel (0) target = $region61
      $region60: #{mlp_forward.1} parent=56 // pred_region
        // Predicated region
        $region62: #{mlp_forward.1} parent=60 // pred_check
          _
        $region63: #{mlp_forward.1} parent=60 // pred_check_branch
          %2834 = sbr.rel target = $region65
        $region64: #{mlp_forward.1} parent=60 // pred_region
          // Predicated region
          $region77: #{mlp_forward.1} parent=64 // pred_check
            _
          $region78: #{mlp_forward.1} parent=64 // pred_check_branch
            %2850 = sbr.rel (0) target = $region80
          $region79: #{mlp_forward.1} parent=64 // pred_region
            %s2852 = ssub.s32 2, 1
            loop: start=0, step=1, limit=1
            $region81: #{mlp_forward.1} parent=79 // loop_pre_header
              _
            $region82: #{mlp_forward.1} parent=79 // loop_header
              %s2854 = sphi 0, %s2858
              %p2855 = scmp.ge.s32.totalorder %s2854, 1
              %s2859 = sphi [#allocation9], [#allocation9]
              %s2860 = sphi %s9, %s9
            $region83: #{mlp_forward.1} parent=79 // loop_header_branch
              %2857 = sbr.rel (%p2855) target = $region87
            $region84: #{mlp_forward.1} parent=79 // loop_body
              %v2861 = vld [vmem:[%s2859] sm:%s2852]
              %2862 = vst [vmem:[%s2860] sm:%s2852] %v2861
            $region85: #{mlp_forward.1} parent=79 // loop_footer
              %s2858 = sadd.s32 1, %s2854
            $region86: #{mlp_forward.1} parent=79 // loop_footer_branch
              %2853 = sbr.rel target = $region82
            $region87: #{mlp_forward.1} parent=79 // loop_exit
              _
          $region80: #{mlp_forward.1} parent=64 // pred_fallthru
            _
        $region65: #{mlp_forward.1} parent=60 // pred_fallthru
          _
        // Predicated region
        $region66: #{mlp_forward.1} parent=60 // pred_check
          _
        $region67: #{mlp_forward.1} parent=60 // pred_check_branch
          %2836 = sbr.rel (0) target = $region69
        $region68: #{mlp_forward.1} parent=60 // pred_region
          %s2838 = ssub.s32 2, 1
          loop: start=0, step=1, limit=1
          $region70: #{mlp_forward.1} parent=68 // loop_pre_header
            _
          $region71: #{mlp_forward.1} parent=68 // loop_header
            %s2840 = sphi 0, %s2844
            %p2841 = scmp.ge.s32.totalorder %s2840, 1
            %s2845 = sphi [#allocation9], [#allocation9]
            %s2846 = sphi %s9, %s9
          $region72: #{mlp_forward.1} parent=68 // loop_header_branch
            %2843 = sbr.rel (%p2841) target = $region76
          $region73: #{mlp_forward.1} parent=68 // loop_body
            %v2847 = vld [vmem:[%s2845] sm:%s2838]
            %2848 = vst [vmem:[%s2846] sm:%s2838] %v2847
          $region74: #{mlp_forward.1} parent=68 // loop_footer
            %s2844 = sadd.s32 1, %s2840
          $region75: #{mlp_forward.1} parent=68 // loop_footer_branch
            %2839 = sbr.rel target = $region71
          $region76: #{mlp_forward.1} parent=68 // loop_exit
            _
        $region69: #{mlp_forward.1} parent=60 // pred_fallthru
          _
      $region61: #{mlp_forward.1} parent=56 // pred_fallthru
        _
      %2863 = vnop
    $region57: #{mlp_forward.1} parent=1 // pred_fallthru
      _
    // Predicated region
    $region88: #{mlp_forward.1} parent=1 // pred_check
      _
    $region89: #{mlp_forward.1} parent=1 // pred_check_branch
      %2865 = sbr.rel (0) target = $region91
    $region90: #{mlp_forward.1} parent=1 // pred_region
      _
    $region91: #{mlp_forward.1} parent=1 // pred_fallthru
      _
    %2866 = vsyncpa [#allocation3], 1
    %2867 = vsyncpa [#allocation5], 1
    %2868 = vsyncpa [#allocation8], 1

</llo_original>
